<compile_context>
chip_gen: v7x
topology: tpu7x:2x2x1
jax: 0.10.0
libtpu: 0.0.40
codegen_flags: <defaults>
</compile_context>

<pallas_src>
import functools

import jax
import jax.numpy as jnp
import numpy as np
from jax.experimental import pallas as pl
from jax.experimental.pallas import tpu as pltpu


def _round_up(x, m):
    return ((x + m - 1) // m) * m


# ----------------------------------------------------------------------------
# Encoder: patchify projection (stand-in for ResNet50) -> features [B, L, E]
# ----------------------------------------------------------------------------
def _encoder_proj_kernel(p_ref, w_ref, b_ref, o_ref):
    # p: (rb, 3*P*P)   w: (3*P*P, E)   b: (1, E)   o: (rb, E)
    o_ref[...] = (
        jnp.dot(p_ref[...], w_ref[...], preferred_element_type=jnp.float32)
        + b_ref[...]
    )


def encoder_forward(images, enc_w, enc_b, patch, encoder_dim, block_rows=256):
    B, C, H, W = images.shape
    Hp, Wp = H // patch, W // patch
    L = Hp * Wp
    # (B, C, Hp, P, Wp, P) -> (B, Hp, Wp, C, P, P) -> (B*L, C*P*P)
    patches = images.reshape(B, C, Hp, patch, Wp, patch)
    patches = patches.transpose(0, 2, 4, 1, 3, 5).reshape(B * L, C * patch * patch)
    R, K = patches.shape
    rb = R if R <= block_rows else block_rows   # row tiling for real image sizes

    feats = pl.pallas_call(
        _encoder_proj_kernel,
        out_shape=jax.ShapeDtypeStruct((R, encoder_dim), jnp.float32),
        grid=(pl.cdiv(R, rb),),
        in_specs=[
            pl.BlockSpec((rb, K), lambda i: (i, 0)),
            pl.BlockSpec((K, encoder_dim), lambda i: (0, 0)),
            pl.BlockSpec((1, encoder_dim), lambda i: (0, 0)),
        ],
        out_specs=pl.BlockSpec((rb, encoder_dim), lambda i: (i, 0)),
        compiler_params=pltpu.CompilerParams(dimension_semantics=("parallel",)),
    )(patches, enc_w, enc_b)
    return feats.reshape(B, L, encoder_dim)


# ----------------------------------------------------------------------------
# Decoder recurrence: one grid step == one time step (attention + LSTMCell)
# ----------------------------------------------------------------------------
def _decoder_step_kernel(
    feats_ref, emb_ref,
    uw_ref, ub_ref, ww_ref, wb_ref, aw_ref, ab_ref,
    ihcw_ref, ihcb_ref,
    wg_ref, bg_ref,
    h_out_ref, alpha_out_ref,
    uhs_scr, h_scr, c_scr,
    *, B, L, E, Ap, Dp, Lp,
):
    s = pl.program_id(0)
    feats = feats_ref[...]                                   # (B, L, E)

    # Step-0 one-time work: hoisted attention projection + init_hidden_state
    # (init_h / init_c fused into a single (E, 2*Dp) matmul).
    @pl.when(s == 0)
    def _():
        feats2d = feats.reshape(B * L, E)                    # lane-dense 2-D matmul
        uhs = (
            jnp.dot(feats2d, uw_ref[...], preferred_element_type=jnp.float32)
            + ub_ref[...]
        )
        uhs_scr[...] = uhs.reshape(B, L, Ap)
        mean_f = jnp.mean(feats, axis=1)                     # (B, E)
        hc0 = (
            jnp.dot(mean_f, ihcw_ref[...], preferred_element_type=jnp.float32)
            + ihcb_ref[...]
        )                                                    # (B, 2*Dp)
        h_scr[...] = hc0[:, :Dp]
        c_scr[...] = hc0[:, Dp:]

    h = h_scr[...]                                           # (B, Dp)  (pad lanes == 0)
    c = c_scr[...]                                           # (B, Dp)

    # --- Attention (u_hs reused from scratch; Ap pad lanes contribute 0) ---
    w_ah = (
        jnp.dot(h, ww_ref[...], preferred_element_type=jnp.float32) + wb_ref[...]
    )                                                        # (B, Ap)
    comb = jnp.tanh(uhs_scr[...] + w_ah[:, None, :])         # (B, L, Ap)
    scores = jnp.sum(comb * aw_ref[...], axis=-1) + ab_ref[0, 0]   # (B, L); A_b in SMEM
    m = jnp.max(scores, axis=1, keepdims=True)
    e = jnp.exp(scores - m)
    denom = jnp.sum(e, axis=1, keepdims=True)
    alpha = e * pl.reciprocal(denom, approx=True)            # (B, L)
    context = jnp.sum(feats * alpha[:, :, None], axis=1)     # (B, E)

    # --- LSTMCell, single fused gate matmul (gate order i, f, g, o) ---
    emb = emb_ref[0]                                         # (B, Em)
    x = jnp.concatenate([emb, context, h], axis=-1)          # (B, Em+E+Dp)
    gates = (
        jnp.dot(x, wg_ref[...], preferred_element_type=jnp.float32) + bg_ref[...]
    )                                                        # (B, 4*Dp), 128-aligned slices
    i_g = jax.nn.sigmoid(gates[:, 0 * Dp:1 * Dp])
    f_g = jax.nn.sigmoid(gates[:, 1 * Dp:2 * Dp])
    g_g = jnp.tanh(gates[:, 2 * Dp:3 * Dp])
    o_g = jax.nn.sigmoid(gates[:, 3 * Dp:4 * Dp])
    c_new = f_g * c + i_g * g_g
    h_new = o_g * jnp.tanh(c_new)
    h_scr[...] = h_new
    c_scr[...] = c_new

    # Lane-dense per-step stores (Dp, Lp are multiples of 128).
    h_out_ref[0] = h_new
    if Lp == L:
        alpha_out_ref[0] = alpha
    else:
        alpha_out_ref[0] = jnp.concatenate(
            [alpha, jnp.zeros((B, Lp - L), jnp.float32)], axis=-1)


# ----------------------------------------------------------------------------
# FC head: parallel (B*T, Dp) @ (Dp, V) matmul, bf16 MXU operands, f32 accum.
# ----------------------------------------------------------------------------
def _fc_head_kernel(h_ref, w_ref, b_ref, o_ref):
    o_ref[...] = (
        jnp.dot(h_ref[...].astype(w_ref.dtype), w_ref[...],
                preferred_element_type=jnp.float32)
        + b_ref[...]
    )


def fc_head(h_bt, fcn_w_p, fcn_b, block_rows=512):
    R, Dp = h_bt.shape
    V = fcn_w_p.shape[1]
    rb = R if R <= block_rows else block_rows
    return pl.pallas_call(
        _fc_head_kernel,
        out_shape=jax.ShapeDtypeStruct((R, V), jnp.float32),
        grid=(pl.cdiv(R, rb),),
        in_specs=[
            pl.BlockSpec((rb, Dp), lambda i: (i, 0)),
            pl.BlockSpec((Dp, V), lambda i: (0, 0)),
            pl.BlockSpec((1, V), lambda i: (0, 0)),
        ],
        out_specs=pl.BlockSpec((rb, V), lambda i: (i, 0)),
        compiler_params=pltpu.CompilerParams(dimension_semantics=("parallel",)),
    )(h_bt, fcn_w_p, fcn_b)


# ----------------------------------------------------------------------------
def decoder_forward(features, captions, params):
    B, L, E = features.shape
    T = captions.shape[1]
    seq_len = T - 1
    Em = params["emb_table"].shape[1]
    D = params["whh"].shape[0]
    V = params["fcn_w"].shape[1]
    A = params["U_w"].shape[1]
    Dp = _round_up(D, 128)     # lane-align decoder state / gates
    Ap = _round_up(A, 128)     # lane-align attention projections
    Lp = _round_up(L, 128)     # lane-dense alpha store
    f32 = jnp.float32

    # ---- trace-time weight packing & lane-alignment padding (zeros) ----
    uw_p = jnp.pad(params["U_w"], ((0, 0), (0, Ap - A)))                 # (E, Ap)
    ub_p = jnp.pad(params["U_b"], ((0, 0), (0, Ap - A)))                 # (1, Ap)
    ww_p = jnp.pad(params["W_w"], ((0, Dp - D), (0, Ap - A)))            # (Dp, Ap)
    wb_p = jnp.pad(params["W_b"], ((0, 0), (0, Ap - A)))                 # (1, Ap)
    aw_p = jnp.pad(params["A_w"], ((0, 0), (0, Ap - A)))                 # (1, Ap)

    ihw_p = jnp.pad(params["init_h_w"], ((0, 0), (0, Dp - D)))           # (E, Dp)
    ihb_p = jnp.pad(params["init_h_b"], ((0, 0), (0, Dp - D)))
    icw_p = jnp.pad(params["init_c_w"], ((0, 0), (0, Dp - D)))
    icb_p = jnp.pad(params["init_c_b"], ((0, 0), (0, Dp - D)))
    ihcw_p = jnp.concatenate([ihw_p, icw_p], axis=1)                     # (E, 2Dp)
    ihcb_p = jnp.concatenate([ihb_p, icb_p], axis=1)                     # (1, 2Dp)

    whh_p = jnp.pad(params["whh"], ((0, Dp - D), (0, 0)))                # (Dp, 4D)
    wg = jnp.concatenate([params["wih_e"], params["wih_c"], whh_p], axis=0)
    wg_p = jnp.pad(wg.reshape(-1, 4, D),
                   ((0, 0), (0, 0), (0, Dp - D))).reshape(-1, 4 * Dp)    # (Em+E+Dp, 4Dp)
    bg = params["b_ih"] + params["b_hh"]                                 # fused bias
    bg_p = jnp.pad(bg.reshape(1, 4, D),
                   ((0, 0), (0, 0), (0, Dp - D))).reshape(1, 4 * Dp)

    fcn_w_p = jnp.pad(params["fcn_w"], ((0, Dp - D), (0, 0))).astype(jnp.bfloat16)

    # embedding lookup (glue), time-major so each step gets a lane-dense block
    embeds = params["emb_table"][captions]                               # (B, T, Em)
    embeds_t = jnp.transpose(embeds[:, :seq_len, :], (1, 0, 2))          # (T-1, B, Em)

    kernel = functools.partial(_decoder_step_kernel,
                               B=B, L=L, E=E, Ap=Ap, Dp=Dp, Lp=Lp)
    full2 = lambda shp: pl.BlockSpec(shp, lambda s: (0, 0))

    h_all, alphas_t = pl.pallas_call(
        kernel,
        out_shape=(
            jax.ShapeDtypeStruct((seq_len, B, Dp), f32),
            jax.ShapeDtypeStruct((seq_len, B, Lp), f32),
        ),
        grid_spec=pltpu.PrefetchScalarGridSpec(
            num_scalar_prefetch=0,
            grid=(seq_len,),
            in_specs=[
                pl.BlockSpec((B, L, E), lambda s: (0, 0, 0)),    # features (resident)
                pl.BlockSpec((1, B, Em), lambda s: (s, 0, 0)),   # embeds (time-major)
                full2((E, Ap)), full2((1, Ap)),                  # U
                full2((Dp, Ap)), full2((1, Ap)),                 # W
                full2((1, Ap)),                                  # A weight
                pl.BlockSpec(memory_space=pltpu.MemorySpace.SMEM),   # A bias (scalar)
                full2((E, 2 * Dp)), full2((1, 2 * Dp)),          # fused init_h|init_c
                full2((Em + E + Dp, 4 * Dp)), full2((1, 4 * Dp)),  # fused gates
            ],
            out_specs=[
                pl.BlockSpec((1, B, Dp), lambda s: (s, 0, 0)),   # h per step
                pl.BlockSpec((1, B, Lp), lambda s: (s, 0, 0)),   # alpha per step
            ],
            scratch_shapes=[
                pltpu.VMEM((B, L, Ap), f32),  # hoisted u_hs
                pltpu.VMEM((B, Dp), f32),     # h
                pltpu.VMEM((B, Dp), f32),     # c
            ],
        ),
        compiler_params=pltpu.CompilerParams(
            dimension_semantics=("arbitrary",),   # recurrence: must stay sequential
            vmem_limit_bytes=32 * 1024 * 1024,
        ),
    )(
        features, embeds_t,
        uw_p, ub_p, ww_p, wb_p,
        aw_p, params["A_b"],
        ihcw_p, ihcb_p,
        wg_p, bg_p,
    )

    # Parallel FC head over all (b, t) rows; preds written directly in
    # (B, T-1, V) layout (no transpose of the large preds tensor).
    h_bt = jnp.transpose(h_all, (1, 0, 2)).reshape(B * seq_len, Dp)      # small
    preds = fc_head(h_bt, fcn_w_p, params["fcn_b"]).reshape(B, seq_len, V)
    alphas = jnp.transpose(alphas_t[:, :, :L], (1, 0, 2))                # small
    return preds, alphas


def encoder_decoder_forward(images, captions, params, patch, encoder_dim):
    features = encoder_forward(images, params["enc_w"], params["enc_b"],
                               patch, encoder_dim)
    return decoder_forward(features, captions, params)


# ----------------------------------------------------------------------------
# Pure-JAX reference (for verification)
# ----------------------------------------------------------------------------
def reference_forward(images, captions, params, patch, encoder_dim):
    B, C, H, W = images.shape
    Hp, Wp = H // patch, W // patch
    L = Hp * Wp
    patches = images.reshape(B, C, Hp, patch, Wp, patch)
    patches = patches.transpose(0, 2, 4, 1, 3, 5).reshape(B * L, -1)
    feats = (patches @ params["enc_w"] + params["enc_b"]).reshape(B, L, encoder_dim)

    embeds = params["emb_table"][captions]
    mean_f = feats.mean(axis=1)
    h = mean_f @ params["init_h_w"] + params["init_h_b"]
    c = mean_f @ params["init_c_w"] + params["init_c_b"]
    T = captions.shape[1]
    D = params["whh"].shape[0]
    preds, alphas = [], []
    for s in range(T - 1):
        u_hs = jnp.einsum("ble,ea->bla", feats, params["U_w"]) + params["U_b"]
        w_ah = h @ params["W_w"] + params["W_b"]
        comb = jnp.tanh(u_hs + w_ah[:, None, :])
        scores = jnp.sum(comb * params["A_w"], axis=-1) + params["A_b"][0, 0]
        alpha = jax.nn.softmax(scores, axis=1)
        context = jnp.sum(feats * alpha[:, :, None], axis=1)
        gates = (embeds[:, s] @ params["wih_e"] + context @ params["wih_c"]
                 + params["b_ih"] + h @ params["whh"] + params["b_hh"])
        i_g = jax.nn.sigmoid(gates[:, 0 * D:1 * D])
        f_g = jax.nn.sigmoid(gates[:, 1 * D:2 * D])
        g_g = jnp.tanh(gates[:, 2 * D:3 * D])
        o_g = jax.nn.sigmoid(gates[:, 3 * D:4 * D])
        c = f_g * c + i_g * g_g
        h = o_g * jnp.tanh(c)
        preds.append(h @ params["fcn_w"] + params["fcn_b"])
        alphas.append(alpha)
    return jnp.stack(preds, axis=1), jnp.stack(alphas, axis=1)


# ----------------------------------------------------------------------------
if __name__ == "__main__":
    # Small, forward-consistent shapes
    B, H, W, C = 2, 16, 16, 3
    patch = 4
    embed_size, vocab_size = 32, 128
    attention_dim, encoder_dim, decoder_dim = 32, 64, 64
    T = 8  # caption length -> seq_length = 7

    key = jax.random.PRNGKey(0)
    ks = jax.random.split(key, 24)
    sc = 0.1

    params = {
        # encoder stand-in (patchify conv as matmul): [C*P*P, E]
        "enc_w": sc * jax.random.normal(ks[0], (C * patch * patch, encoder_dim), jnp.float32),
        "enc_b": sc * jax.random.normal(ks[1], (1, encoder_dim), jnp.float32),
        # embedding
        "emb_table": sc * jax.random.normal(ks[2], (vocab_size, embed_size), jnp.float32),
        # attention: U (E->A), W (D->A), A (A->1)  (stored input-major: x @ W)
        "U_w": sc * jax.random.normal(ks[3], (encoder_dim, attention_dim), jnp.float32),
        "U_b": sc * jax.random.normal(ks[4], (1, attention_dim), jnp.float32),
        "W_w": sc * jax.random.normal(ks[5], (decoder_dim, attention_dim), jnp.float32),
        "W_b": sc * jax.random.normal(ks[6], (1, attention_dim), jnp.float32),
        "A_w": sc * jax.random.normal(ks[7], (1, attention_dim), jnp.float32),
        "A_b": sc * jax.random.normal(ks[8], (1, 1), jnp.float32),
        # init_h / init_c (E -> D)
        "init_h_w": sc * jax.random.normal(ks[9], (encoder_dim, decoder_dim), jnp.float32),
        "init_h_b": sc * jax.random.normal(ks[10], (1, decoder_dim), jnp.float32),
        "init_c_w": sc * jax.random.normal(ks[11], (encoder_dim, decoder_dim), jnp.float32),
        "init_c_b": sc * jax.random.normal(ks[12], (1, decoder_dim), jnp.float32),
        # LSTMCell (input = [embed, context]), gate order i,f,g,o; w_ih split
        "wih_e": sc * jax.random.normal(ks[13], (embed_size, 4 * decoder_dim), jnp.float32),
        "wih_c": sc * jax.random.normal(ks[14], (encoder_dim, 4 * decoder_dim), jnp.float32),
        "b_ih": sc * jax.random.normal(ks[15], (1, 4 * decoder_dim), jnp.float32),
        "whh": sc * jax.random.normal(ks[16], (decoder_dim, 4 * decoder_dim), jnp.float32),
        "b_hh": sc * jax.random.normal(ks[17], (1, 4 * decoder_dim), jnp.float32),
        # output head (D -> V)
        "fcn_w": sc * jax.random.normal(ks[18], (decoder_dim, vocab_size), jnp.float32),
        "fcn_b": sc * jax.random.normal(ks[19], (1, vocab_size), jnp.float32),
    }

    images = jax.random.normal(ks[20], (B, C, H, W), jnp.float32)
    captions = jax.random.randint(ks[21], (B, T), 0, vocab_size, jnp.int32)

    fwd = jax.jit(functools.partial(encoder_decoder_forward,
                                    patch=patch, encoder_dim=encoder_dim))
    preds, alphas = fwd(images, captions, params)
    jax.block_until_ready((preds, alphas))

    # verify against pure-JAX reference
    ref_preds, ref_alphas = reference_forward(images, captions, params, patch, encoder_dim)
    assert preds.shape == (B, T - 1, vocab_size)
    assert alphas.shape == (B, T - 1, (H // patch) * (W // patch))
    np.testing.assert_allclose(np.asarray(preds), np.asarray(ref_preds),
                               rtol=2e-2, atol=2e-2)
    np.testing.assert_allclose(np.asarray(alphas), np.asarray(ref_alphas),
                               rtol=2e-2, atol=2e-2)

    print("KERNEL_OK")
</pallas_src>

<mosaic_0001>
module attributes {stable_mosaic.version = 11 : i64} {
  func.func @_encoder_proj_kernel(%arg0: i32, %arg1: memref<32x48xf32, #tpu.memory_space<vmem>>, %arg2: memref<48x64xf32, #tpu.memory_space<vmem>>, %arg3: memref<1x64xf32, #tpu.memory_space<vmem>>, %arg4: memref<32x64xf32, #tpu.memory_space<vmem>>) attributes {dimension_semantics = [#tpu.dimension_semantics<parallel>], iteration_bounds = array<i64: 1>, scalar_prefetch = 0 : i64, scratch_operands = 0 : i64, tpu.core_type = #tpu.core_type<tc>, window_params = [{transform_indices = @transform_0, window_bounds = array<i64: 32, 48>}, {pipeline_mode = #tpu.pipeline_mode<synchronous>, transform_indices = @transform_1, window_bounds = array<i64: 48, 64>}, {pipeline_mode = #tpu.pipeline_mode<synchronous>, transform_indices = @transform_2, window_bounds = array<i64: 1, 64>}, {transform_indices = @transform_3, window_bounds = array<i64: 32, 64>}]} {
    %c0 = arith.constant 0 : index
    %c0_0 = arith.constant 0 : index
    %0 = vector.load %arg1[%c0, %c0_0] : memref<32x48xf32, #tpu.memory_space<vmem>>, vector<32x48xf32>
    %c0_1 = arith.constant 0 : index
    %c0_2 = arith.constant 0 : index
    %1 = vector.load %arg2[%c0_1, %c0_2] : memref<48x64xf32, #tpu.memory_space<vmem>>, vector<48x64xf32>
    %cst = arith.constant dense<0.000000e+00> : vector<32x64xf32>
    %2 = tpu.matmul %0, %1, %cst {dimension_numbers = #tpu.dot_dimension_numbers<[1], [0], [0], [1], [0, 0, 1, 1], [], []>} : vector<32x48xf32>, vector<48x64xf32>, vector<32x64xf32> -> vector<32x64xf32>
    %c0_3 = arith.constant 0 : index
    %c0_4 = arith.constant 0 : index
    %3 = vector.load %arg3[%c0_3, %c0_4] : memref<1x64xf32, #tpu.memory_space<vmem>>, vector<1x64xf32>
    %4 = vector.broadcast %3 : vector<1x64xf32> to vector<32x64xf32>
    %5 = arith.addf %2, %4 : vector<32x64xf32>
    %c0_5 = arith.constant 0 : index
    %c0_6 = arith.constant 0 : index
    %6 = vector.load %arg4[%c0_5, %c0_6] : memref<32x64xf32, #tpu.memory_space<vmem>>, vector<32x64xf32>
    tpu.vector_store %arg4[%c0_5, %c0_6], %5 {strides = array<i32>} : memref<32x64xf32, #tpu.memory_space<vmem>>, vector<32x64xf32>,
    return
  }
  func.func @transform_0(%arg0: i32) -> (i32, i32) {
    %c0_i32 = arith.constant 0 : i32
    %c0_i32_0 = arith.constant 0 : i32
    return %arg0, %c0_i32 : i32, i32
  }
  func.func @transform_1(%arg0: i32) -> (i32, i32) {
    %c0_i32 = arith.constant 0 : i32
    %c0_i32_0 = arith.constant 0 : i32
    %c0_i32_1 = arith.constant 0 : i32
    return %c0_i32, %c0_i32_0 : i32, i32
  }
  func.func @transform_2(%arg0: i32) -> (i32, i32) {
    %c0_i32 = arith.constant 0 : i32
    %c0_i32_0 = arith.constant 0 : i32
    %c0_i32_1 = arith.constant 0 : i32
    return %c0_i32, %c0_i32_0 : i32, i32
  }
  func.func @transform_3(%arg0: i32) -> (i32, i32) {
    %c0_i32 = arith.constant 0 : i32
    %c0_i32_0 = arith.constant 0 : i32
    return %arg0, %c0_i32 : i32, i32
  }
}

module attributes {stable_mosaic.version = 11 : i64} {
  func.func @_fc_head_kernel(%arg0: i32, %arg1: memref<14x128xf32, #tpu.memory_space<vmem>>, %arg2: memref<128x128xbf16, #tpu.memory_space<vmem>>, %arg3: memref<1x128xf32, #tpu.memory_space<vmem>>, %arg4: memref<14x128xf32, #tpu.memory_space<vmem>>) attributes {dimension_semantics = [#tpu.dimension_semantics<parallel>], iteration_bounds = array<i64: 1>, scalar_prefetch = 0 : i64, scratch_operands = 0 : i64, tpu.core_type = #tpu.core_type<tc>, window_params = [{transform_indices = @transform_0, window_bounds = array<i64: 14, 128>}, {pipeline_mode = #tpu.pipeline_mode<synchronous>, transform_indices = @transform_1, window_bounds = array<i64: 128, 128>}, {pipeline_mode = #tpu.pipeline_mode<synchronous>, transform_indices = @transform_2, window_bounds = array<i64: 1, 128>}, {transform_indices = @transform_3, window_bounds = array<i64: 14, 128>}]} {
    %c0 = arith.constant 0 : index
    %c0_0 = arith.constant 0 : index
    %0 = vector.load %arg1[%c0, %c0_0] : memref<14x128xf32, #tpu.memory_space<vmem>>, vector<14x128xf32>
    %1 = arith.truncf %0 : vector<14x128xf32> to vector<14x128xbf16>
    %c0_1 = arith.constant 0 : index
    %c0_2 = arith.constant 0 : index
    %2 = vector.load %arg2[%c0_1, %c0_2] : memref<128x128xbf16, #tpu.memory_space<vmem>>, vector<128x128xbf16>
    %cst = arith.constant dense<0.000000e+00> : vector<14x128xf32>
    %3 = tpu.matmul %1, %2, %cst {dimension_numbers = #tpu.dot_dimension_numbers<[1], [0], [0], [1], [0, 0, 1, 1], [], []>} : vector<14x128xbf16>, vector<128x128xbf16>, vector<14x128xf32> -> vector<14x128xf32>
    %c0_3 = arith.constant 0 : index
    %c0_4 = arith.constant 0 : index
    %4 = vector.load %arg3[%c0_3, %c0_4] : memref<1x128xf32, #tpu.memory_space<vmem>>, vector<1x128xf32>
    %5 = vector.broadcast %4 : vector<1x128xf32> to vector<14x128xf32>
    %6 = arith.addf %3, %5 : vector<14x128xf32>
    %c0_5 = arith.constant 0 : index
    %c0_6 = arith.constant 0 : index
    %7 = vector.load %arg4[%c0_5, %c0_6] : memref<14x128xf32, #tpu.memory_space<vmem>>, vector<14x128xf32>
    tpu.vector_store %arg4[%c0_5, %c0_6], %6 {strides = array<i32>} : memref<14x128xf32, #tpu.memory_space<vmem>>, vector<14x128xf32>,
    return
  }
  func.func @transform_0(%arg0: i32) -> (i32, i32) {
    %c0_i32 = arith.constant 0 : i32
    %c0_i32_0 = arith.constant 0 : i32
    return %arg0, %c0_i32 : i32, i32
  }
  func.func @transform_1(%arg0: i32) -> (i32, i32) {
    %c0_i32 = arith.constant 0 : i32
    %c0_i32_0 = arith.constant 0 : i32
    %c0_i32_1 = arith.constant 0 : i32
    return %c0_i32, %c0_i32_0 : i32, i32
  }
  func.func @transform_2(%arg0: i32) -> (i32, i32) {
    %c0_i32 = arith.constant 0 : i32
    %c0_i32_0 = arith.constant 0 : i32
    %c0_i32_1 = arith.constant 0 : i32
    return %c0_i32, %c0_i32_0 : i32, i32
  }
  func.func @transform_3(%arg0: i32) -> (i32, i32) {
    %c0_i32 = arith.constant 0 : i32
    %c0_i32_0 = arith.constant 0 : i32
    return %arg0, %c0_i32 : i32, i32
  }
}

module attributes {stable_mosaic.version = 11 : i64} {
  func.func @_decoder_step_kernel(%arg0: i32, %arg1: memref<2x16x64xf32, #tpu.memory_space<vmem>>, %arg2: memref<1x2x32xf32, #tpu.memory_space<vmem>>, %arg3: memref<64x128xf32, #tpu.memory_space<vmem>>, %arg4: memref<1x128xf32, #tpu.memory_space<vmem>>, %arg5: memref<128x128xf32, #tpu.memory_space<vmem>>, %arg6: memref<1x128xf32, #tpu.memory_space<vmem>>, %arg7: memref<1x128xf32, #tpu.memory_space<vmem>>, %arg8: memref<1x1xf32, #tpu.memory_space<smem>>, %arg9: memref<64x256xf32, #tpu.memory_space<vmem>>, %arg10: memref<1x256xf32, #tpu.memory_space<vmem>>, %arg11: memref<224x512xf32, #tpu.memory_space<vmem>>, %arg12: memref<1x512xf32, #tpu.memory_space<vmem>>, %arg13: memref<1x2x128xf32, #tpu.memory_space<vmem>>, %arg14: memref<1x2x128xf32, #tpu.memory_space<vmem>>, %arg15: memref<2x16x128xf32, #tpu.memory_space<vmem>>, %arg16: memref<2x128xf32, #tpu.memory_space<vmem>>, %arg17: memref<2x128xf32, #tpu.memory_space<vmem>>) attributes {dimension_semantics = [#tpu.dimension_semantics<arbitrary>], iteration_bounds = array<i64: 7>, scalar_prefetch = 0 : i64, scratch_operands = 3 : i64, tpu.core_type = #tpu.core_type<tc>, window_params = [{pipeline_mode = #tpu.pipeline_mode<synchronous>, transform_indices = @transform_0, window_bounds = array<i64: 2, 16, 64>}, {transform_indices = @transform_1, window_bounds = array<i64: 1, 2, 32>}, {pipeline_mode = #tpu.pipeline_mode<synchronous>, transform_indices = @transform_2, window_bounds = array<i64: 64, 128>}, {pipeline_mode = #tpu.pipeline_mode<synchronous>, transform_indices = @transform_3, window_bounds = array<i64: 1, 128>}, {pipeline_mode = #tpu.pipeline_mode<synchronous>, transform_indices = @transform_4, window_bounds = array<i64: 128, 128>}, {pipeline_mode = #tpu.pipeline_mode<synchronous>, transform_indices = @transform_5, window_bounds = array<i64: 1, 128>}, {pipeline_mode = #tpu.pipeline_mode<synchronous>, transform_indices = @transform_6, window_bounds = array<i64: 1, 128>}, {transform_indices = @transform_7, window_bounds = array<i64: 1, 1>}, {pipeline_mode = #tpu.pipeline_mode<synchronous>, transform_indices = @transform_8, window_bounds = array<i64: 64, 256>}, {pipeline_mode = #tpu.pipeline_mode<synchronous>, transform_indices = @transform_9, window_bounds = array<i64: 1, 256>}, {pipeline_mode = #tpu.pipeline_mode<synchronous>, transform_indices = @transform_10, window_bounds = array<i64: 224, 512>}, {pipeline_mode = #tpu.pipeline_mode<synchronous>, transform_indices = @transform_11, window_bounds = array<i64: 1, 512>}, {transform_indices = @transform_12, window_bounds = array<i64: 1, 2, 128>}, {transform_indices = @transform_13, window_bounds = array<i64: 1, 2, 128>}]} {
    %c0 = arith.constant 0 : index
    %c0_0 = arith.constant 0 : index
    %c0_1 = arith.constant 0 : index
    %0 = vector.load %arg1[%c0, %c0_0, %c0_1] : memref<2x16x64xf32, #tpu.memory_space<vmem>>, vector<2x16x64xf32>
    %c0_i32 = arith.constant 0 : i32
    %1 = arith.cmpi eq, %arg0, %c0_i32 : i32
    %2 = arith.extui %1 : i1 to i32
    %c0_i32_2 = arith.constant 0 : i32
    %3 = arith.cmpi ne, %2, %c0_i32_2 : i32
    scf.if %3 {
      %81 = vector.shape_cast %0 : vector<2x16x64xf32> to vector<32x64xf32>
      %c0_44 = arith.constant 0 : index
      %c0_45 = arith.constant 0 : index
      %82 = vector.load %arg3[%c0_44, %c0_45] : memref<64x128xf32, #tpu.memory_space<vmem>>, vector<64x128xf32>
      %cst_46 = arith.constant dense<0.000000e+00> : vector<32x128xf32>
      %83 = tpu.matmul %81, %82, %cst_46 {dimension_numbers = #tpu.dot_dimension_numbers<[1], [0], [0], [1], [0, 0, 1, 1], [], []>} : vector<32x64xf32>, vector<64x128xf32>, vector<32x128xf32> -> vector<32x128xf32>
      %c0_47 = arith.constant 0 : index
      %c0_48 = arith.constant 0 : index
      %84 = vector.load %arg4[%c0_47, %c0_48] : memref<1x128xf32, #tpu.memory_space<vmem>>, vector<1x128xf32>
      %85 = vector.broadcast %84 : vector<1x128xf32> to vector<32x128xf32>
      %86 = arith.addf %83, %85 : vector<32x128xf32>
      %87 = vector.shape_cast %86 : vector<32x128xf32> to vector<2x16x128xf32>
      %c0_49 = arith.constant 0 : index
      %c0_50 = arith.constant 0 : index
      %c0_51 = arith.constant 0 : index
      %88 = vector.load %arg15[%c0_49, %c0_50, %c0_51] : memref<2x16x128xf32, #tpu.memory_space<vmem>>, vector<2x16x128xf32>
      tpu.vector_store %arg15[%c0_49, %c0_50, %c0_51], %87 {strides = array<i32>} : memref<2x16x128xf32, #tpu.memory_space<vmem>>, vector<2x16x128xf32>,
      %cst_52 = arith.constant dense<0.000000e+00> : vector<2x64xf32>
      %89 = vector.multi_reduction <add>, %0, %cst_52 [1] : vector<2x16x64xf32> to vector<2x64xf32>
      %cst_53 = arith.constant 1.600000e+01 : f32
      %90 = vector.broadcast %cst_53 : f32 to vector<2x64xf32>
      %91 = arith.divf %89, %90 : vector<2x64xf32>
      %c0_54 = arith.constant 0 : index
      %c0_55 = arith.constant 0 : index
      %92 = vector.load %arg9[%c0_54, %c0_55] : memref<64x256xf32, #tpu.memory_space<vmem>>, vector<64x256xf32>
      %cst_56 = arith.constant dense<0.000000e+00> : vector<2x256xf32>
      %93 = tpu.matmul %91, %92, %cst_56 {dimension_numbers = #tpu.dot_dimension_numbers<[1], [0], [0], [1], [0, 0, 1, 1], [], []>} : vector<2x64xf32>, vector<64x256xf32>, vector<2x256xf32> -> vector<2x256xf32>
      %c0_57 = arith.constant 0 : index
      %c0_58 = arith.constant 0 : index
      %94 = vector.load %arg10[%c0_57, %c0_58] : memref<1x256xf32, #tpu.memory_space<vmem>>, vector<1x256xf32>
      %95 = vector.broadcast %94 : vector<1x256xf32> to vector<2x256xf32>
      %96 = arith.addf %93, %95 : vector<2x256xf32>
      %97 = vector.extract_strided_slice %96 {offsets = [0, 0], sizes = [2, 128], strides = [1, 1]} : vector<2x256xf32> to vector<2x128xf32>
      %c0_59 = arith.constant 0 : index
      %c0_60 = arith.constant 0 : index
      %98 = vector.load %arg16[%c0_59, %c0_60] : memref<2x128xf32, #tpu.memory_space<vmem>>, vector<2x128xf32>
      tpu.vector_store %arg16[%c0_59, %c0_60], %97 {strides = array<i32>} : memref<2x128xf32, #tpu.memory_space<vmem>>, vector<2x128xf32>,
      %99 = vector.extract_strided_slice %96 {offsets = [0, 128], sizes = [2, 128], strides = [1, 1]} : vector<2x256xf32> to vector<2x128xf32>
      %c0_61 = arith.constant 0 : index
      %c0_62 = arith.constant 0 : index
      %100 = vector.load %arg17[%c0_61, %c0_62] : memref<2x128xf32, #tpu.memory_space<vmem>>, vector<2x128xf32>
      tpu.vector_store %arg17[%c0_61, %c0_62], %99 {strides = array<i32>} : memref<2x128xf32, #tpu.memory_space<vmem>>, vector<2x128xf32>,
    } else {
    }
    %c0_3 = arith.constant 0 : index
    %c0_4 = arith.constant 0 : index
    %4 = vector.load %arg16[%c0_3, %c0_4] : memref<2x128xf32, #tpu.memory_space<vmem>>, vector<2x128xf32>
    %c0_5 = arith.constant 0 : index
    %c0_6 = arith.constant 0 : index
    %5 = vector.load %arg17[%c0_5, %c0_6] : memref<2x128xf32, #tpu.memory_space<vmem>>, vector<2x128xf32>
    %c0_7 = arith.constant 0 : index
    %c0_8 = arith.constant 0 : index
    %6 = vector.load %arg5[%c0_7, %c0_8] : memref<128x128xf32, #tpu.memory_space<vmem>>, vector<128x128xf32>
    %cst = arith.constant dense<0.000000e+00> : vector<2x128xf32>
    %7 = tpu.matmul %4, %6, %cst {dimension_numbers = #tpu.dot_dimension_numbers<[1], [0], [0], [1], [0, 0, 1, 1], [], []>} : vector<2x128xf32>, vector<128x128xf32>, vector<2x128xf32> -> vector<2x128xf32>
    %c0_9 = arith.constant 0 : index
    %c0_10 = arith.constant 0 : index
    %8 = vector.load %arg6[%c0_9, %c0_10] : memref<1x128xf32, #tpu.memory_space<vmem>>, vector<1x128xf32>
    %9 = vector.broadcast %8 : vector<1x128xf32> to vector<2x128xf32>
    %10 = arith.addf %7, %9 : vector<2x128xf32>
    %c0_11 = arith.constant 0 : index
    %c0_12 = arith.constant 0 : index
    %c0_13 = arith.constant 0 : index
    %11 = vector.load %arg15[%c0_11, %c0_12, %c0_13] : memref<2x16x128xf32, #tpu.memory_space<vmem>>, vector<2x16x128xf32>
    %12 = vector.shape_cast %10 : vector<2x128xf32> to vector<2x1x128xf32>
    %13 = vector.broadcast %12 : vector<2x1x128xf32> to vector<2x16x128xf32>
    %14 = arith.addf %11, %13 : vector<2x16x128xf32>
    %15 = math.tanh %14 : vector<2x16x128xf32>
    %c0_14 = arith.constant 0 : index
    %c0_15 = arith.constant 0 : index
    %16 = vector.load %arg7[%c0_14, %c0_15] : memref<1x128xf32, #tpu.memory_space<vmem>>, vector<1x128xf32>
    %17 = vector.shape_cast %16 : vector<1x128xf32> to vector<1x1x128xf32>
    %18 = vector.broadcast %17 : vector<1x1x128xf32> to vector<2x16x128xf32>
    %19 = arith.mulf %15, %18 : vector<2x16x128xf32>
    %cst_16 = arith.constant dense<0.000000e+00> : vector<2x16xf32>
    %20 = vector.multi_reduction <add>, %19, %cst_16 [2] : vector<2x16x128xf32> to vector<2x16xf32>
    %c0_17 = arith.constant 0 : index
    %c0_18 = arith.constant 0 : index
    %21 = memref.load %arg8[%c0_17, %c0_18] : memref<1x1xf32, #tpu.memory_space<smem>>
    %22 = vector.broadcast %21 : f32 to vector<2x16xf32>
    %23 = arith.addf %20, %22 : vector<2x16xf32>
    %cst_19 = arith.constant dense<0xFF800000> : vector<2xf32>
    %24 = vector.multi_reduction <maximumf>, %23, %cst_19 [1] : vector<2x16xf32> to vector<2xf32>
    %25 = vector.shape_cast %24 : vector<2xf32> to vector<2x1xf32>
    %26 = vector.broadcast %25 : vector<2x1xf32> to vector<2x16xf32>
    %27 = arith.subf %23, %26 : vector<2x16xf32>
    %28 = math.exp %27 : vector<2x16xf32>
    %cst_20 = arith.constant dense<0.000000e+00> : vector<2xf32>
    %29 = vector.multi_reduction <add>, %28, %cst_20 [1] : vector<2x16xf32> to vector<2xf32>
    %30 = vector.shape_cast %29 : vector<2xf32> to vector<2x1xf32>
    %31 = tpu.reciprocal %30 {approx = true} : vector<2x1xf32> -> vector<2x1xf32>
    %32 = vector.broadcast %31 : vector<2x1xf32> to vector<2x16xf32>
    %33 = arith.mulf %28, %32 : vector<2x16xf32>
    %34 = vector.shape_cast %33 : vector<2x16xf32> to vector<2x16x1xf32>
    %35 = vector.broadcast %34 : vector<2x16x1xf32> to vector<2x16x64xf32>
    %36 = arith.mulf %0, %35 : vector<2x16x64xf32>
    %cst_21 = arith.constant dense<0.000000e+00> : vector<2x64xf32>
    %37 = vector.multi_reduction <add>, %36, %cst_21 [1] : vector<2x16x64xf32> to vector<2x64xf32>
    %c0_22 = arith.constant 0 : index
    %c0_23 = arith.constant 0 : index
    %c0_24 = arith.constant 0 : index
    %38 = vector.load %arg2[%c0_22, %c0_23, %c0_24] : memref<1x2x32xf32, #tpu.memory_space<vmem>>, vector<1x2x32xf32>
    %39 = vector.shape_cast %38 : vector<1x2x32xf32> to vector<2x32xf32>
    %40 = tpu.concatenate %39, %37, %4 in 1 : vector<2x32xf32>, vector<2x64xf32>, vector<2x128xf32> -> vector<2x224xf32>
    %c0_25 = arith.constant 0 : index
    %c0_26 = arith.constant 0 : index
    %41 = vector.load %arg11[%c0_25, %c0_26] : memref<224x512xf32, #tpu.memory_space<vmem>>, vector<224x512xf32>
    %cst_27 = arith.constant dense<0.000000e+00> : vector<2x512xf32>
    %42 = tpu.matmul %40, %41, %cst_27 {dimension_numbers = #tpu.dot_dimension_numbers<[1], [0], [0], [1], [0, 0, 1, 1], [], []>} : vector<2x224xf32>, vector<224x512xf32>, vector<2x512xf32> -> vector<2x512xf32>
    %c0_28 = arith.constant 0 : index
    %c0_29 = arith.constant 0 : index
    %43 = vector.load %arg12[%c0_28, %c0_29] : memref<1x512xf32, #tpu.memory_space<vmem>>, vector<1x512xf32>
    %44 = vector.broadcast %43 : vector<1x512xf32> to vector<2x512xf32>
    %45 = arith.addf %42, %44 : vector<2x512xf32>
    %46 = vector.extract_strided_slice %45 {offsets = [0, 0], sizes = [2, 128], strides = [1, 1]} : vector<2x512xf32> to vector<2x128xf32>
    %47 = arith.negf %46 : vector<2x128xf32>
    %48 = math.exp %47 : vector<2x128xf32>
    %cst_30 = arith.constant 1.000000e+00 : f32
    %49 = vector.broadcast %cst_30 : f32 to vector<2x128xf32>
    %50 = arith.addf %49, %48 : vector<2x128xf32>
    %51 = arith.divf %49, %50 : vector<2x128xf32>
    %52 = vector.extract_strided_slice %45 {offsets = [0, 128], sizes = [2, 128], strides = [1, 1]} : vector<2x512xf32> to vector<2x128xf32>
    %53 = arith.negf %52 : vector<2x128xf32>
    %54 = math.exp %53 : vector<2x128xf32>
    %cst_31 = arith.constant 1.000000e+00 : f32
    %55 = vector.broadcast %cst_31 : f32 to vector<2x128xf32>
    %56 = arith.addf %55, %54 : vector<2x128xf32>
    %57 = arith.divf %55, %56 : vector<2x128xf32>
    %58 = vector.extract_strided_slice %45 {offsets = [0, 256], sizes = [2, 128], strides = [1, 1]} : vector<2x512xf32> to vector<2x128xf32>
    %59 = math.tanh %58 : vector<2x128xf32>
    %60 = vector.extract_strided_slice %45 {offsets = [0, 384], sizes = [2, 128], strides = [1, 1]} : vector<2x512xf32> to vector<2x128xf32>
    %61 = arith.negf %60 : vector<2x128xf32>
    %62 = math.exp %61 : vector<2x128xf32>
    %cst_32 = arith.constant 1.000000e+00 : f32
    %63 = vector.broadcast %cst_32 : f32 to vector<2x128xf32>
    %64 = arith.addf %63, %62 : vector<2x128xf32>
    %65 = arith.divf %63, %64 : vector<2x128xf32>
    %66 = arith.mulf %57, %5 : vector<2x128xf32>
    %67 = arith.mulf %51, %59 : vector<2x128xf32>
    %68 = arith.addf %66, %67 : vector<2x128xf32>
    %69 = math.tanh %68 : vector<2x128xf32>
    %70 = arith.mulf %65, %69 : vector<2x128xf32>
    %c0_33 = arith.constant 0 : index
    %c0_34 = arith.constant 0 : index
    %71 = vector.load %arg16[%c0_33, %c0_34] : memref<2x128xf32, #tpu.memory_space<vmem>>, vector<2x128xf32>
    tpu.vector_store %arg16[%c0_33, %c0_34], %70 {strides = array<i32>} : memref<2x128xf32, #tpu.memory_space<vmem>>, vector<2x128xf32>,
    %c0_35 = arith.constant 0 : index
    %c0_36 = arith.constant 0 : index
    %72 = vector.load %arg17[%c0_35, %c0_36] : memref<2x128xf32, #tpu.memory_space<vmem>>, vector<2x128xf32>
    tpu.vector_store %arg17[%c0_35, %c0_36], %68 {strides = array<i32>} : memref<2x128xf32, #tpu.memory_space<vmem>>, vector<2x128xf32>,
    %c0_37 = arith.constant 0 : index
    %c0_38 = arith.constant 0 : index
    %c0_39 = arith.constant 0 : index
    %73 = vector.load %arg13[%c0_37, %c0_38, %c0_39] : memref<1x2x128xf32, #tpu.memory_space<vmem>>, vector<1x2x128xf32>
    %74 = vector.shape_cast %73 : vector<1x2x128xf32> to vector<2x128xf32>
    %75 = vector.shape_cast %70 : vector<2x128xf32> to vector<1x2x128xf32>
    tpu.vector_store %arg13[%c0_37, %c0_38, %c0_39], %75 {strides = array<i32>} : memref<1x2x128xf32, #tpu.memory_space<vmem>>, vector<1x2x128xf32>,
    %cst_40 = arith.constant 0.000000e+00 : f32
    %76 = vector.broadcast %cst_40 : f32 to vector<2x112xf32>
    %77 = tpu.concatenate %33, %76 in 1 : vector<2x16xf32>, vector<2x112xf32> -> vector<2x128xf32>
    %c0_41 = arith.constant 0 : index
    %c0_42 = arith.constant 0 : index
    %c0_43 = arith.constant 0 : index
    %78 = vector.load %arg14[%c0_41, %c0_42, %c0_43] : memref<1x2x128xf32, #tpu.memory_space<vmem>>, vector<1x2x128xf32>
    %79 = vector.shape_cast %78 : vector<1x2x128xf32> to vector<2x128xf32>
    %80 = vector.shape_cast %77 : vector<2x128xf32> to vector<1x2x128xf32>
    tpu.vector_store %arg14[%c0_41, %c0_42, %c0_43], %80 {strides = array<i32>} : memref<1x2x128xf32, #tpu.memory_space<vmem>>, vector<1x2x128xf32>,
    return
  }
  func.func @transform_0(%arg0: i32) -> (i32, i32, i32) {
    %c0_i32 = arith.constant 0 : i32
    %c0_i32_0 = arith.constant 0 : i32
    %c0_i32_1 = arith.constant 0 : i32
    %c0_i32_2 = arith.constant 0 : i32
    return %c0_i32, %c0_i32_0, %c0_i32_1 : i32, i32, i32
  }
  func.func @transform_1(%arg0: i32) -> (i32, i32, i32) {
    %c0_i32 = arith.constant 0 : i32
    %c0_i32_0 = arith.constant 0 : i32
    %c0_i32_1 = arith.constant 0 : i32
    return %arg0, %c0_i32, %c0_i32_0 : i32, i32, i32
  }
  func.func @transform_2(%arg0: i32) -> (i32, i32) {
    %c0_i32 = arith.constant 0 : i32
    %c0_i32_0 = arith.constant 0 : i32
    %c0_i32_1 = arith.constant 0 : i32
    return %c0_i32, %c0_i32_0 : i32, i32
  }
  func.func @transform_3(%arg0: i32) -> (i32, i32) {
    %c0_i32 = arith.constant 0 : i32
    %c0_i32_0 = arith.constant 0 : i32
    %c0_i32_1 = arith.constant 0 : i32
    return %c0_i32, %c0_i32_0 : i32, i32
  }
  func.func @transform_4(%arg0: i32) -> (i32, i32) {
    %c0_i32 = arith.constant 0 : i32
    %c0_i32_0 = arith.constant 0 : i32
    %c0_i32_1 = arith.constant 0 : i32
    return %c0_i32, %c0_i32_0 : i32, i32
  }
  func.func @transform_5(%arg0: i32) -> (i32, i32) {
    %c0_i32 = arith.constant 0 : i32
    %c0_i32_0 = arith.constant 0 : i32
    %c0_i32_1 = arith.constant 0 : i32
    return %c0_i32, %c0_i32_0 : i32, i32
  }
  func.func @transform_6(%arg0: i32) -> (i32, i32) {
    %c0_i32 = arith.constant 0 : i32
    %c0_i32_0 = arith.constant 0 : i32
    %c0_i32_1 = arith.constant 0 : i32
    return %c0_i32, %c0_i32_0 : i32, i32
  }
  func.func @transform_7(%arg0: i32) -> (i32, i32) {
    %c0_i32 = arith.constant 0 : i32
    %c0_i32_0 = arith.constant 0 : i32
    %c0_i32_1 = arith.constant 0 : i32
    return %c0_i32, %c0_i32_0 : i32, i32
  }
  func.func @transform_8(%arg0: i32) -> (i32, i32) {
    %c0_i32 = arith.constant 0 : i32
    %c0_i32_0 = arith.constant 0 : i32
    %c0_i32_1 = arith.constant 0 : i32
    return %c0_i32, %c0_i32_0 : i32, i32
  }
  func.func @transform_9(%arg0: i32) -> (i32, i32) {
    %c0_i32 = arith.constant 0 : i32
    %c0_i32_0 = arith.constant 0 : i32
    %c0_i32_1 = arith.constant 0 : i32
    return %c0_i32, %c0_i32_0 : i32, i32
  }
  func.func @transform_10(%arg0: i32) -> (i32, i32) {
    %c0_i32 = arith.constant 0 : i32
    %c0_i32_0 = arith.constant 0 : i32
    %c0_i32_1 = arith.constant 0 : i32
    return %c0_i32, %c0_i32_0 : i32, i32
  }
  func.func @transform_11(%arg0: i32) -> (i32, i32) {
    %c0_i32 = arith.constant 0 : i32
    %c0_i32_0 = arith.constant 0 : i32
    %c0_i32_1 = arith.constant 0 : i32
    return %c0_i32, %c0_i32_0 : i32, i32
  }
  func.func @transform_12(%arg0: i32) -> (i32, i32, i32) {
    %c0_i32 = arith.constant 0 : i32
    %c0_i32_0 = arith.constant 0 : i32
    %c0_i32_1 = arith.constant 0 : i32
    return %arg0, %c0_i32, %c0_i32_0 : i32, i32, i32
  }
  func.func @transform_13(%arg0: i32) -> (i32, i32, i32) {
    %c0_i32 = arith.constant 0 : i32
    %c0_i32_0 = arith.constant 0 : i32
    %c0_i32_1 = arith.constant 0 : i32
    return %arg0, %c0_i32, %c0_i32_0 : i32, i32, i32
  }
}

</mosaic_0001>

<llo_original>
// kernel: encoder_decoder_forward.5
$region0: #{encoder_decoder_forward.5}
  #allocation0 [shape = 'u32[]', space=smem, size = 0x4, offset = 0x4, fixed_abs, tag = 'smem constant byte address 0x4 - core index']
  #allocation1 [shape = 'u32[144,128]{1,0:T(1,128)}', space=vmem, size = 0x12000, scoped, tag = 'internal scratch']
  %s0 = inlined_call_operand.vmem [shape: f32[14,128], index: 0, kind: input, shape index: {}]
  %s1 = inlined_call_operand.vmem [shape: bf16[128,128], index: 1, kind: input, shape index: {}]
  %s2 = inlined_call_operand.vmem [shape: f32[1,128], index: 2, kind: input, shape index: {}]
  %s3 = inlined_call_operand.vmem [shape: f32[14,128], index: 3, kind: output, shape index: {}]
  %s4 = sld [smem:[#allocation0]]
  $region22: #{encoder_decoder_forward.5} parent=0
    _
  %s6 = ssub.s32 1, %s4
  %s7 = scalar_select 0, %s6, %s4
  // Predicated region
  $region2: #{encoder_decoder_forward.5} parent=0 // pred_check
    _
  $region3: #{encoder_decoder_forward.5} parent=0 // pred_check_branch
    %9 = sbr.rel (0) target = $region5
  $region4: #{encoder_decoder_forward.5} parent=0 // pred_region
    _
  $region5: #{encoder_decoder_forward.5} parent=0 // pred_fallthru
    _
  // Predicated region
  $region6: #{encoder_decoder_forward.5} parent=0 // pred_check
    _
  $region7: #{encoder_decoder_forward.5} parent=0 // pred_check_branch
    %11 = sbr.rel (0) target = $region9
  $region8: #{encoder_decoder_forward.5} parent=0 // pred_region
    _
  $region9: #{encoder_decoder_forward.5} parent=0 // pred_fallthru
    _
  // Predicated region
  $region10: #{encoder_decoder_forward.5} parent=0 // pred_check
    _
  $region11: #{encoder_decoder_forward.5} parent=0 // pred_check_branch
    %13 = sbr.rel (0) target = $region13
  $region12: #{encoder_decoder_forward.5} parent=0 // pred_region
    _
  $region13: #{encoder_decoder_forward.5} parent=0 // pred_fallthru
    _
  %v15 = vld [vmem:[%s0] sm:$0xff]
  %v16 = vld [vmem:[%s0 + $0x8] sm:$0x3f]
  %v17 = vpack.c.bf16 %v16, %v15
  %v18 = vld [vmem:[%s1] sm:$0xf]
  %v19 = vld [vmem:[%s1 + $0x4] sm:$0xf]
  %v20 = vld [vmem:[%s1 + $0x8] sm:$0xf]
  %v21 = vld [vmem:[%s1 + $0xc] sm:$0xf]
  %v22 = vld [vmem:[%s1 + $0x10] sm:$0xf]
  %v23 = vld [vmem:[%s1 + $0x14] sm:$0xf]
  %v24 = vld [vmem:[%s1 + $0x18] sm:$0xf]
  %v25 = vld [vmem:[%s1 + $0x1c] sm:$0xf]
  %v26 = vld [vmem:[%s1 + $0x20] sm:$0xf]
  %v27 = vld [vmem:[%s1 + $0x24] sm:$0xf]
  %v28 = vld [vmem:[%s1 + $0x28] sm:$0xf]
  %v29 = vld [vmem:[%s1 + $0x2c] sm:$0xf]
  %v30 = vld [vmem:[%s1 + $0x30] sm:$0xf]
  %v31 = vld [vmem:[%s1 + $0x34] sm:$0xf]
  %v32 = vld [vmem:[%s1 + $0x38] sm:$0xf]
  %v33 = vld [vmem:[%s1 + $0x3c] sm:$0xf]
  %v34 = vld [vmem:[%s2] sm:$0x1]
  %v36 = vlaneseq
  %v37 = vshrl.u32 %v36, 7
  %v38 = vsub.s32 0, %v37
  %v39 = vrot.slane %v34, %v38
  %v57 = vunpack.c.l.b16 %v18
  %v58 = vunpack.c.l.b16 %v19
  %v59 = vunpack.c.l.b16 %v20
  %v60 = vunpack.c.l.b16 %v21
  %v61 = vunpack.c.l.b16 %v22
  %v62 = vunpack.c.l.b16 %v23
  %v63 = vunpack.c.l.b16 %v24
  %v64 = vunpack.c.l.b16 %v25
  %v65 = vunpack.c.l.b16 %v26
  %v66 = vunpack.c.l.b16 %v27
  %v67 = vunpack.c.l.b16 %v28
  %v68 = vunpack.c.l.b16 %v29
  %v69 = vunpack.c.l.b16 %v30
  %v70 = vunpack.c.l.b16 %v31
  %v71 = vunpack.c.l.b16 %v32
  %v72 = vunpack.c.l.b16 %v33
  %v73 = vpack.c.b16 %v58, %v57
  %v74 = vpack.c.b16 %v60, %v59
  %v75 = vpack.c.b16 %v62, %v61
  %v76 = vpack.c.b16 %v64, %v63
  %v77 = vpack.c.b16 %v66, %v65
  %v78 = vpack.c.b16 %v68, %v67
  %v79 = vpack.c.b16 %v70, %v69
  %v80 = vpack.c.b16 %v72, %v71
  %89 = vmatprep.subr.bf16.mxu0 0
  %90 = vmatpush1.bf16.msra.mxu0 %v73
  %91 = vmatprep.subr.bf16.mxu0 0
  %92 = vmatpush1.bf16.msra.mxu0 %v74
  %93 = vmatprep.subr.bf16.mxu0 0
  %94 = vmatpush1.bf16.msra.mxu0 %v75
  %95 = vmatprep.subr.bf16.mxu0 0
  %96 = vmatpush1.bf16.msra.mxu0 %v76
  %97 = vmatprep.subr.bf16.mxu0 0
  %98 = vmatpush1.bf16.msra.mxu0 %v77
  %99 = vmatprep.subr.bf16.mxu0 0
  %100 = vmatpush1.bf16.msra.mxu0 %v78
  %101 = vmatprep.subr.bf16.mxu0 0
  %102 = vmatpush1.bf16.msra.mxu0 %v79
  %103 = vmatprep.subr.bf16.mxu0 0
  %104 = vmatpush1.bf16.msra.mxu0 %v80
  %105 = vmatprep.subr.bf16.mxu0 0
  %106 = vmatpush1.bf16.msra.mxu0 0
  %107 = vmatprep.subr.bf16.mxu0 0
  %108 = vmatpush1.bf16.msra.mxu0 0
  %109 = vmatprep.subr.bf16.mxu0 0
  %110 = vmatpush1.bf16.msra.mxu0 0
  %111 = vmatprep.subr.bf16.mxu0 0
  %112 = vmatpush1.bf16.msra.mxu0 0
  %113 = vmatprep.subr.bf16.mxu0 0
  %114 = vmatpush1.bf16.msra.mxu0 0
  %115 = vmatprep.subr.bf16.mxu0 0
  %116 = vmatpush1.bf16.msra.mxu0 0
  %117 = vmatprep.subr.bf16.mxu0 0
  %118 = vmatpush1.bf16.msra.mxu0 0
  %119 = vmatprep.subr.bf16.mxu0 0
  %120 = vmatpush1.bf16.msra.mxu0 0
  %121 = vmatprep.mubr.bf16.mxu0 0
  %122 = vmatmul.mubr.bf16.gmra.mrb[0].mxu0 %v17
  %v123 = vpop.f32.mrb[0].mxu0
  %v124 = vadd.f32 %v39, %v123
  %v125 = vpop.f32.mrb[0].mxu0
  %v126 = vpop.f32.mrb[0].mxu0
  %v127 = vadd.f32 %v39, %v126
  %v128 = vpop.f32.mrb[0].mxu0
  %129 = vdwg.mxu0
  %130 = vst [vmem:[%s3] sm:$0xff] %v124
  %131 = vst [vmem:[%s3 + $0x8] sm:$0x3f] %v127
  // Predicated region
  $region14: #{encoder_decoder_forward.5} parent=0 // pred_check
    _
  $region15: #{encoder_decoder_forward.5} parent=0 // pred_check_branch
    %133 = sbr.rel (0) target = $region17
  $region16: #{encoder_decoder_forward.5} parent=0 // pred_region
    _
  $region17: #{encoder_decoder_forward.5} parent=0 // pred_fallthru
    _
  // Predicated region
  $region18: #{encoder_decoder_forward.5} parent=0 // pred_check
    _
  $region19: #{encoder_decoder_forward.5} parent=0 // pred_check_branch
    %135 = sbr.rel (0) target = $region21
  $region20: #{encoder_decoder_forward.5} parent=0 // pred_region
    _
  $region21: #{encoder_decoder_forward.5} parent=0 // pred_fallthru
    _

// kernel: encoder_decoder_forward.3
$region0: #{encoder_decoder_forward.3}
  #allocation0 [shape = 'u32[]', space=smem, size = 0x4, offset = 0x4, fixed_abs, tag = 'smem constant byte address 0x4 - core index']
  #allocation1 [shape = 'u32[144,128]{1,0:T(1,128)}', space=vmem, size = 0x12000, scoped, tag = 'internal scratch']
  %s0 = inlined_call_operand.vmem [shape: f32[32,48], index: 0, kind: input, shape index: {}]
  %s1 = inlined_call_operand.vmem [shape: f32[48,64], index: 1, kind: input, shape index: {}]
  %s2 = inlined_call_operand.vmem [shape: f32[1,64], index: 2, kind: input, shape index: {}]
  %s3 = inlined_call_operand.vmem [shape: f32[32,64], index: 3, kind: output, shape index: {}]
  %s4 = sld [smem:[#allocation0]]
  $region22: #{encoder_decoder_forward.3} parent=0
    _
  %s6 = ssub.s32 1, %s4
  %s7 = scalar_select 0, %s6, %s4
  // Predicated region
  $region2: #{encoder_decoder_forward.3} parent=0 // pred_check
    _
  $region3: #{encoder_decoder_forward.3} parent=0 // pred_check_branch
    %9 = sbr.rel (0) target = $region5
  $region4: #{encoder_decoder_forward.3} parent=0 // pred_region
    _
  $region5: #{encoder_decoder_forward.3} parent=0 // pred_fallthru
    _
  // Predicated region
  $region6: #{encoder_decoder_forward.3} parent=0 // pred_check
    _
  $region7: #{encoder_decoder_forward.3} parent=0 // pred_check_branch
    %11 = sbr.rel (0) target = $region9
  $region8: #{encoder_decoder_forward.3} parent=0 // pred_region
    _
  $region9: #{encoder_decoder_forward.3} parent=0 // pred_fallthru
    _
  // Predicated region
  $region10: #{encoder_decoder_forward.3} parent=0 // pred_check
    _
  $region11: #{encoder_decoder_forward.3} parent=0 // pred_check_branch
    %13 = sbr.rel (0) target = $region13
  $region12: #{encoder_decoder_forward.3} parent=0 // pred_region
    _
  $region13: #{encoder_decoder_forward.3} parent=0 // pred_fallthru
    _
  %v14 = vld [vmem:[%s0] sm:$0xff]
  %v15 = vld [vmem:[%s0 + $0x8] sm:$0xff]
  %v16 = vld [vmem:[%s0 + $0x10] sm:$0xff]
  %v17 = vld [vmem:[%s0 + $0x18] sm:$0xff]
  %v18 = vld [vmem:[%s1] sm:$0xff]
  %v19 = vld [vmem:[%s1 + $0x8] sm:$0xff]
  %v20 = vld [vmem:[%s1 + $0x10] sm:$0xff]
  %v21 = vld [vmem:[%s1 + $0x18] sm:$0xff]
  %v22 = vld [vmem:[%s1 + $0x20] sm:$0xff]
  %v23 = vld [vmem:[%s1 + $0x28] sm:$0xff]
  %v24 = vld [vmem:[%s2] sm:$0x1]
  %v26 = vlaneseq
  %v27 = vshrl.u32 %v26, 7
  %v28 = vsub.s32 0, %v27
  %v29 = vrot.slane %v24, %v28
  %vm31 = vcmask 392192
  %v33 = vsel %vm31, %v14, 0
  %v36 = vsel %vm31, %v15, 0
  %v39 = vsel %vm31, %v16, 0
  %v42 = vsel %vm31, %v17, 0
  %44 = vmatprep.subr.mxu0 0.0
  %45 = vmatpush1.msra.mxu0 %v18
  %46 = vmatprep.subr.mxu0 0.0
  %47 = vmatpush1.msra.mxu0 %v19
  %48 = vmatprep.subr.mxu0 0.0
  %49 = vmatpush1.msra.mxu0 %v20
  %50 = vmatprep.subr.mxu0 0.0
  %51 = vmatpush1.msra.mxu0 %v21
  %52 = vmatprep.subr.mxu0 0.0
  %53 = vmatpush1.msra.mxu0 %v22
  %54 = vmatprep.subr.mxu0 0.0
  %55 = vmatpush1.msra.mxu0 %v23
  %56 = vmatprep.subr.mxu0 0.0
  %57 = vmatpush1.msra.mxu0 0.0
  %58 = vmatprep.subr.mxu0 0.0
  %59 = vmatpush1.msra.mxu0 0.0
  %60 = vmatprep.subr.mxu0 0.0
  %61 = vmatpush1.msra.mxu0 0.0
  %62 = vmatprep.subr.mxu0 0.0
  %63 = vmatpush1.msra.mxu0 0.0
  %64 = vmatprep.subr.mxu0 0.0
  %65 = vmatpush1.msra.mxu0 0.0
  %66 = vmatprep.subr.mxu0 0.0
  %67 = vmatpush1.msra.mxu0 0.0
  %68 = vmatprep.subr.mxu0 0.0
  %69 = vmatpush1.msra.mxu0 0.0
  %70 = vmatprep.subr.mxu0 0.0
  %71 = vmatpush1.msra.mxu0 0.0
  %72 = vmatprep.subr.mxu0 0.0
  %73 = vmatpush1.msra.mxu0 0.0
  %74 = vmatprep.subr.mxu0 0.0
  %75 = vmatpush1.msra.mxu0 0.0
  %76 = vmatprep.subr.mxu0 0.0
  %77 = vmatpush1.msra.mxu0 0.0
  %78 = vmatprep.subr.mxu0 0.0
  %79 = vmatpush1.msra.mxu0 0.0
  %80 = vmatprep.subr.mxu0 0.0
  %81 = vmatpush1.msra.mxu0 0.0
  %82 = vmatprep.subr.mxu0 0.0
  %83 = vmatpush1.msra.mxu0 0.0
  %84 = vmatprep.subr.mxu0 0.0
  %85 = vmatpush1.msra.mxu0 0.0
  %86 = vmatprep.subr.mxu0 0.0
  %87 = vmatpush1.msra.mxu0 0.0
  %88 = vmatprep.subr.mxu0 0.0
  %89 = vmatpush1.msra.mxu0 0.0
  %90 = vmatprep.subr.mxu0 0.0
  %91 = vmatpush1.msra.mxu0 0.0
  %92 = vmatprep.subr.mxu0 0.0
  %93 = vmatpush1.msra.mxu0 0.0
  %94 = vmatprep.subr.mxu0 0.0
  %95 = vmatpush1.msra.mxu0 0.0
  %96 = vmatprep.subr.mxu0 0.0
  %97 = vmatpush1.msra.mxu0 0.0
  %98 = vmatprep.subr.mxu0 0.0
  %99 = vmatpush1.msra.mxu0 0.0
  %100 = vmatprep.subr.mxu0 0.0
  %101 = vmatpush1.msra.mxu0 0.0
  %102 = vmatprep.subr.mxu0 0.0
  %103 = vmatpush1.msra.mxu0 0.0
  %104 = vmatprep.subr.mxu0 0.0
  %105 = vmatpush1.msra.mxu0 0.0
  %106 = vmatprep.subr.mxu0 0.0
  %107 = vmatpush1.msra.mxu0 0.0
  %108 = vmatprep.mubr.f32.mxu0 0.0
  %109 = vmatmul.mubr.f32.gmra.mrb[0].mxu0 %v33
  %v110 = vpop.f32.mrb[0].mxu0
  %v111 = vadd.f32 %v29, %v110
  %v112 = vpop.f32.mrb[0].mxu0
  %113 = vmatprep.mubr.f32.mxu0 0.0
  %114 = vmatmul.mubr.f32.gmra.mrb[0].mxu0 %v36
  %v115 = vpop.f32.mrb[0].mxu0
  %v116 = vadd.f32 %v29, %v115
  %v117 = vpop.f32.mrb[0].mxu0
  %118 = vmatprep.mubr.f32.mxu0 0.0
  %119 = vmatmul.mubr.f32.gmra.mrb[0].mxu0 %v39
  %v120 = vpop.f32.mrb[0].mxu0
  %v121 = vadd.f32 %v29, %v120
  %v122 = vpop.f32.mrb[0].mxu0
  %123 = vmatprep.mubr.f32.mxu0 0.0
  %124 = vmatmul.mubr.f32.gmra.mrb[0].mxu0 %v42
  %v125 = vpop.f32.mrb[0].mxu0
  %v126 = vadd.f32 %v29, %v125
  %v127 = vpop.f32.mrb[0].mxu0
  %128 = vdwg.mxu0
  %vm129 = vcmask 523264
  %130 = vst.msk [vmem:[%s3] sm:$0xff] %vm129, %v111
  %131 = vst.msk [vmem:[%s3 + $0x8] sm:$0xff] %vm129, %v116
  %132 = vst.msk [vmem:[%s3 + $0x10] sm:$0xff] %vm129, %v121
  %133 = vst.msk [vmem:[%s3 + $0x18] sm:$0xff] %vm129, %v126
  // Predicated region
  $region14: #{encoder_decoder_forward.3} parent=0 // pred_check
    _
  $region15: #{encoder_decoder_forward.3} parent=0 // pred_check_branch
    %135 = sbr.rel (0) target = $region17
  $region16: #{encoder_decoder_forward.3} parent=0 // pred_region
    _
  $region17: #{encoder_decoder_forward.3} parent=0 // pred_fallthru
    _
  // Predicated region
  $region18: #{encoder_decoder_forward.3} parent=0 // pred_check
    _
  $region19: #{encoder_decoder_forward.3} parent=0 // pred_check_branch
    %137 = sbr.rel (0) target = $region21
  $region20: #{encoder_decoder_forward.3} parent=0 // pred_region
    _
  $region21: #{encoder_decoder_forward.3} parent=0 // pred_fallthru
    _

// kernel: encoder_decoder_forward.4
$region0: #{encoder_decoder_forward.4}
  #allocation0 [shape = 'u32[]', space=smem, size = 0x4, offset = 0x4, fixed_abs, tag = 'smem constant byte address 0x4 - core index']
  #allocation1 [shape = 'u32[144,128]{1,0:T(1,128)}', space=vmem, size = 0x12000, scoped, tag = 'internal scratch']
  #allocation2 [shape = 'f32[2,16,128]{2,1,0:T(8,128)}', space=vmem, size = 0x4000, scoped, tag = 'scratch operand']
  #allocation3 [shape = 'f32[2,128]{1,0:T(2,128)}', space=vmem, size = 0x400, scoped, tag = 'scratch operand']
  #allocation4 [shape = 'f32[2,128]{1,0:T(2,128)}', space=vmem, size = 0x400, scoped, tag = 'scratch operand']
  #allocation5 [shape = 'f32[1,1]{1,0:T(1,128)S(6)}', space=smem, size = 0x200, scoped, tag = 'scoped memory for encoder_decoder_forward.4']
  %s0 = inlined_call_operand.vmem [shape: f32[2,16,64], index: 0, kind: input, shape index: {}]
  %s1 = inlined_call_operand.vmem [shape: f32[7,2,32], index: 1, kind: input, shape index: {}]
  %s2 = inlined_call_operand.vmem [shape: f32[64,128], index: 2, kind: input, shape index: {}]
  %s3 = inlined_call_operand.vmem [shape: f32[1,128], index: 3, kind: input, shape index: {}]
  %s4 = inlined_call_operand.vmem [shape: f32[128,128], index: 4, kind: input, shape index: {}]
  %s5 = inlined_call_operand.vmem [shape: f32[1,128], index: 5, kind: input, shape index: {}]
  %s6 = inlined_call_operand.vmem [shape: f32[1,128], index: 6, kind: input, shape index: {}]
  %s7 = inlined_call_operand.<no memory space> [shape: f32[1,1], index: 7, kind: input, shape index: {}]
  %s8 = inlined_call_operand.vmem [shape: f32[64,256], index: 8, kind: input, shape index: {}]
  %s9 = inlined_call_operand.vmem [shape: f32[1,256], index: 9, kind: input, shape index: {}]
  %s10 = inlined_call_operand.vmem [shape: f32[224,512], index: 10, kind: input, shape index: {}]
  %s11 = inlined_call_operand.vmem [shape: f32[1,512], index: 11, kind: input, shape index: {}]
  %s12 = inlined_call_operand.vmem [shape: f32[7,2,128], index: 12, kind: output, shape index: {0}]
  %s13 = inlined_call_operand.vmem [shape: f32[7,2,128], index: 13, kind: output, shape index: {1}]
  %14 = xla_tuple %s12, %s13
  %s15 = sld [smem:[#allocation0]]
  $region93: #{encoder_decoder_forward.4} parent=0
    _
  %s17 = ssub.s32 1, %s15
  %s18 = scalar_select 0, %s17, %s15
  %19 = sst [smem:[#allocation5]] %s7
  loop: start=0, step=1, limit=9
  $region2: #{encoder_decoder_forward.4} parent=0 // loop_pre_header
    _
  $region3: #{encoder_decoder_forward.4} parent=0 // loop_header
    %s21 = sphi 0, %s25
    %p22 = scmp.ge.s32.totalorder %s21, 9
    %s29 = sphi 0, %s29
    %s31 = sphi 0, %s29
    %s32 = sphi 0, %s31
    %s46 = sphi 0, %s32
    %s52 = sphi 0, %s54
    %s55 = sphi 0, %s52
    %s56 = sphi 0, %s55
    %s72 = sphi 0, %s56
    %s76 = sphi 0, %s76
    %s78 = sphi 0, %s76
    %s79 = sphi 0, %s78
    %s93 = sphi 0, %s79
    %s97 = sphi 0, %s97
    %s99 = sphi 0, %s97
    %s100 = sphi 0, %s99
    %s114 = sphi 0, %s100
    %s118 = sphi 0, %s118
    %s120 = sphi 0, %s118
    %s121 = sphi 0, %s120
    %s135 = sphi 0, %s121
    %s139 = sphi 0, %s139
    %s141 = sphi 0, %s139
    %s142 = sphi 0, %s141
    %s156 = sphi 0, %s142
    %s160 = sphi 0, %s160
    %s162 = sphi 0, %s160
    %s163 = sphi 0, %s162
    %s177 = sphi 0, %s163
    %s181 = sphi 0, %s181
    %s183 = sphi 0, %s181
    %s184 = sphi 0, %s183
    %s198 = sphi 0, %s184
    %s202 = sphi 0, %s202
    %s204 = sphi 0, %s202
    %s205 = sphi 0, %s204
    %s219 = sphi 0, %s205
    %s223 = sphi 0, %s223
    %s225 = sphi 0, %s223
    %s226 = sphi 0, %s225
    %s240 = sphi 0, %s226
    %s244 = sphi 0, %s244
    %s246 = sphi 0, %s244
    %s247 = sphi 0, %s246
    %s261 = sphi 0, %s247
    %s265 = sphi 0, %s265
    %s267 = sphi 0, %s265
    %s268 = sphi 0, %s267
    %s282 = sphi 0, %s268
    %s288 = sphi 0, %s290
    %s291 = sphi 0, %s288
    %s292 = sphi 0, %s291
    %s308 = sphi 0, %s292
    %s314 = sphi 0, %s316
    %s317 = sphi 0, %s314
    %s318 = sphi 0, %s317
    %s334 = sphi 0, %s318
  $region4: #{encoder_decoder_forward.4} parent=0 // loop_header_branch
    %24 = sbr.rel (%p22) target = $region8
  $region5: #{encoder_decoder_forward.4} parent=0 // loop_body
    %s26 = ssub.s32 %s21, 1
    %s27 = ssub.s32 %s21, 2
    %s28 = sadd.s32 %s21, 1
    %s30 = sadd.s32 %s29, 1
    %p33 = scmp.eq.s32.totalorder %s21, 6
    %p34 = scmp.ne.s32.totalorder %s29, %s31
    %p35 = scmp.eq.s32.totalorder %s21, 0
    %p36 = por %p34, %p35
    %p37 = scmp.ne.s32.totalorder %s29, %s31
    %p38 = scmp.eq.s32.totalorder %s26, 6
    %p39 = por %p37, %p38
    %p40 = scmp.ne.s32.totalorder %s31, %s32
    %p41 = scmp.eq.s32.totalorder %s26, 0
    %p42 = por %p40, %p41
    %p43 = scmp.ne.s32.totalorder %s31, %s32
    %p44 = scmp.eq.s32.totalorder %s27, 6
    %p45 = por %p43, %p44
    %p47 = scmp.ne.s32.totalorder %s32, %s46
    %p48 = scmp.eq.s32.totalorder %s27, 0
    %p49 = por %p47, %p48
    %s50 = ssub.s32 %s21, %s28
    %p51 = scmp.eq.s32.totalorder %s50, 0
    %s53 = sadd.s32 %s52, 1
    %s54 = scalar_select %p51, %s52, %s53
    %p57 = pneg %p51
    %p58 = scmp.eq.s32.totalorder %s21, 6
    %p59 = por %p57, %p58
    %p60 = scmp.ne.s32.totalorder %s52, %s55
    %p61 = scmp.eq.s32.totalorder %s21, 0
    %p62 = por %p60, %p61
    %p63 = scmp.ne.s32.totalorder %s52, %s55
    %p64 = scmp.eq.s32.totalorder %s26, 6
    %p65 = por %p63, %p64
    %p66 = scmp.ne.s32.totalorder %s55, %s56
    %p67 = scmp.eq.s32.totalorder %s26, 0
    %p68 = por %p66, %p67
    %p69 = scmp.ne.s32.totalorder %s55, %s56
    %p70 = scmp.eq.s32.totalorder %s27, 6
    %p71 = por %p69, %p70
    %p73 = scmp.ne.s32.totalorder %s56, %s72
    %p74 = scmp.eq.s32.totalorder %s27, 0
    %p75 = por %p73, %p74
    %s77 = sadd.s32 %s76, 1
    %p80 = scmp.eq.s32.totalorder %s21, 6
    %p81 = scmp.ne.s32.totalorder %s76, %s78
    %p82 = scmp.eq.s32.totalorder %s21, 0
    %p83 = por %p81, %p82
    %p84 = scmp.ne.s32.totalorder %s76, %s78
    %p85 = scmp.eq.s32.totalorder %s26, 6
    %p86 = por %p84, %p85
    %p87 = scmp.ne.s32.totalorder %s78, %s79
    %p88 = scmp.eq.s32.totalorder %s26, 0
    %p89 = por %p87, %p88
    %p90 = scmp.ne.s32.totalorder %s78, %s79
    %p91 = scmp.eq.s32.totalorder %s27, 6
    %p92 = por %p90, %p91
    %p94 = scmp.ne.s32.totalorder %s79, %s93
    %p95 = scmp.eq.s32.totalorder %s27, 0
    %p96 = por %p94, %p95
    %s98 = sadd.s32 %s97, 1
    %p101 = scmp.eq.s32.totalorder %s21, 6
    %p102 = scmp.ne.s32.totalorder %s97, %s99
    %p103 = scmp.eq.s32.totalorder %s21, 0
    %p104 = por %p102, %p103
    %p105 = scmp.ne.s32.totalorder %s97, %s99
    %p106 = scmp.eq.s32.totalorder %s26, 6
    %p107 = por %p105, %p106
    %p108 = scmp.ne.s32.totalorder %s99, %s100
    %p109 = scmp.eq.s32.totalorder %s26, 0
    %p110 = por %p108, %p109
    %p111 = scmp.ne.s32.totalorder %s99, %s100
    %p112 = scmp.eq.s32.totalorder %s27, 6
    %p113 = por %p111, %p112
    %p115 = scmp.ne.s32.totalorder %s100, %s114
    %p116 = scmp.eq.s32.totalorder %s27, 0
    %p117 = por %p115, %p116
    %s119 = sadd.s32 %s118, 1
    %p122 = scmp.eq.s32.totalorder %s21, 6
    %p123 = scmp.ne.s32.totalorder %s118, %s120
    %p124 = scmp.eq.s32.totalorder %s21, 0
    %p125 = por %p123, %p124
    %p126 = scmp.ne.s32.totalorder %s118, %s120
    %p127 = scmp.eq.s32.totalorder %s26, 6
    %p128 = por %p126, %p127
    %p129 = scmp.ne.s32.totalorder %s120, %s121
    %p130 = scmp.eq.s32.totalorder %s26, 0
    %p131 = por %p129, %p130
    %p132 = scmp.ne.s32.totalorder %s120, %s121
    %p133 = scmp.eq.s32.totalorder %s27, 6
    %p134 = por %p132, %p133
    %p136 = scmp.ne.s32.totalorder %s121, %s135
    %p137 = scmp.eq.s32.totalorder %s27, 0
    %p138 = por %p136, %p137
    %s140 = sadd.s32 %s139, 1
    %p143 = scmp.eq.s32.totalorder %s21, 6
    %p144 = scmp.ne.s32.totalorder %s139, %s141
    %p145 = scmp.eq.s32.totalorder %s21, 0
    %p146 = por %p144, %p145
    %p147 = scmp.ne.s32.totalorder %s139, %s141
    %p148 = scmp.eq.s32.totalorder %s26, 6
    %p149 = por %p147, %p148
    %p150 = scmp.ne.s32.totalorder %s141, %s142
    %p151 = scmp.eq.s32.totalorder %s26, 0
    %p152 = por %p150, %p151
    %p153 = scmp.ne.s32.totalorder %s141, %s142
    %p154 = scmp.eq.s32.totalorder %s27, 6
    %p155 = por %p153, %p154
    %p157 = scmp.ne.s32.totalorder %s142, %s156
    %p158 = scmp.eq.s32.totalorder %s27, 0
    %p159 = por %p157, %p158
    %s161 = sadd.s32 %s160, 1
    %p164 = scmp.eq.s32.totalorder %s21, 6
    %p165 = scmp.ne.s32.totalorder %s160, %s162
    %p166 = scmp.eq.s32.totalorder %s21, 0
    %p167 = por %p165, %p166
    %p168 = scmp.ne.s32.totalorder %s160, %s162
    %p169 = scmp.eq.s32.totalorder %s26, 6
    %p170 = por %p168, %p169
    %p171 = scmp.ne.s32.totalorder %s162, %s163
    %p172 = scmp.eq.s32.totalorder %s26, 0
    %p173 = por %p171, %p172
    %p174 = scmp.ne.s32.totalorder %s162, %s163
    %p175 = scmp.eq.s32.totalorder %s27, 6
    %p176 = por %p174, %p175
    %p178 = scmp.ne.s32.totalorder %s163, %s177
    %p179 = scmp.eq.s32.totalorder %s27, 0
    %p180 = por %p178, %p179
    %s182 = sadd.s32 %s181, 1
    %p185 = scmp.eq.s32.totalorder %s21, 6
    %p186 = scmp.ne.s32.totalorder %s181, %s183
    %p187 = scmp.eq.s32.totalorder %s21, 0
    %p188 = por %p186, %p187
    %p189 = scmp.ne.s32.totalorder %s181, %s183
    %p190 = scmp.eq.s32.totalorder %s26, 6
    %p191 = por %p189, %p190
    %p192 = scmp.ne.s32.totalorder %s183, %s184
    %p193 = scmp.eq.s32.totalorder %s26, 0
    %p194 = por %p192, %p193
    %p195 = scmp.ne.s32.totalorder %s183, %s184
    %p196 = scmp.eq.s32.totalorder %s27, 6
    %p197 = por %p195, %p196
    %p199 = scmp.ne.s32.totalorder %s184, %s198
    %p200 = scmp.eq.s32.totalorder %s27, 0
    %p201 = por %p199, %p200
    %s203 = sadd.s32 %s202, 1
    %p206 = scmp.eq.s32.totalorder %s21, 6
    %p207 = scmp.ne.s32.totalorder %s202, %s204
    %p208 = scmp.eq.s32.totalorder %s21, 0
    %p209 = por %p207, %p208
    %p210 = scmp.ne.s32.totalorder %s202, %s204
    %p211 = scmp.eq.s32.totalorder %s26, 6
    %p212 = por %p210, %p211
    %p213 = scmp.ne.s32.totalorder %s204, %s205
    %p214 = scmp.eq.s32.totalorder %s26, 0
    %p215 = por %p213, %p214
    %p216 = scmp.ne.s32.totalorder %s204, %s205
    %p217 = scmp.eq.s32.totalorder %s27, 6
    %p218 = por %p216, %p217
    %p220 = scmp.ne.s32.totalorder %s205, %s219
    %p221 = scmp.eq.s32.totalorder %s27, 0
    %p222 = por %p220, %p221
    %s224 = sadd.s32 %s223, 1
    %p227 = scmp.eq.s32.totalorder %s21, 6
    %p228 = scmp.ne.s32.totalorder %s223, %s225
    %p229 = scmp.eq.s32.totalorder %s21, 0
    %p230 = por %p228, %p229
    %p231 = scmp.ne.s32.totalorder %s223, %s225
    %p232 = scmp.eq.s32.totalorder %s26, 6
    %p233 = por %p231, %p232
    %p234 = scmp.ne.s32.totalorder %s225, %s226
    %p235 = scmp.eq.s32.totalorder %s26, 0
    %p236 = por %p234, %p235
    %p237 = scmp.ne.s32.totalorder %s225, %s226
    %p238 = scmp.eq.s32.totalorder %s27, 6
    %p239 = por %p237, %p238
    %p241 = scmp.ne.s32.totalorder %s226, %s240
    %p242 = scmp.eq.s32.totalorder %s27, 0
    %p243 = por %p241, %p242
    %s245 = sadd.s32 %s244, 1
    %p248 = scmp.eq.s32.totalorder %s21, 6
    %p249 = scmp.ne.s32.totalorder %s244, %s246
    %p250 = scmp.eq.s32.totalorder %s21, 0
    %p251 = por %p249, %p250
    %p252 = scmp.ne.s32.totalorder %s244, %s246
    %p253 = scmp.eq.s32.totalorder %s26, 6
    %p254 = por %p252, %p253
    %p255 = scmp.ne.s32.totalorder %s246, %s247
    %p256 = scmp.eq.s32.totalorder %s26, 0
    %p257 = por %p255, %p256
    %p258 = scmp.ne.s32.totalorder %s246, %s247
    %p259 = scmp.eq.s32.totalorder %s27, 6
    %p260 = por %p258, %p259
    %p262 = scmp.ne.s32.totalorder %s247, %s261
    %p263 = scmp.eq.s32.totalorder %s27, 0
    %p264 = por %p262, %p263
    %s266 = sadd.s32 %s265, 1
    %p269 = scmp.eq.s32.totalorder %s21, 6
    %p270 = scmp.ne.s32.totalorder %s265, %s267
    %p271 = scmp.eq.s32.totalorder %s21, 0
    %p272 = por %p270, %p271
    %p273 = scmp.ne.s32.totalorder %s265, %s267
    %p274 = scmp.eq.s32.totalorder %s26, 6
    %p275 = por %p273, %p274
    %p276 = scmp.ne.s32.totalorder %s267, %s268
    %p277 = scmp.eq.s32.totalorder %s26, 0
    %p278 = por %p276, %p277
    %p279 = scmp.ne.s32.totalorder %s267, %s268
    %p280 = scmp.eq.s32.totalorder %s27, 6
    %p281 = por %p279, %p280
    %p283 = scmp.ne.s32.totalorder %s268, %s282
    %p284 = scmp.eq.s32.totalorder %s27, 0
    %p285 = por %p283, %p284
    %s286 = ssub.s32 %s21, %s28
    %p287 = scmp.eq.s32.totalorder %s286, 0
    %s289 = sadd.s32 %s288, 1
    %s290 = scalar_select %p287, %s288, %s289
    %p293 = pneg %p287
    %p294 = scmp.eq.s32.totalorder %s21, 6
    %p295 = por %p293, %p294
    %p296 = scmp.ne.s32.totalorder %s288, %s291
    %p297 = scmp.eq.s32.totalorder %s21, 0
    %p298 = por %p296, %p297
    %p299 = scmp.ne.s32.totalorder %s288, %s291
    %p300 = scmp.eq.s32.totalorder %s26, 6
    %p301 = por %p299, %p300
    %p302 = scmp.ne.s32.totalorder %s291, %s292
    %p303 = scmp.eq.s32.totalorder %s26, 0
    %p304 = por %p302, %p303
    %p305 = scmp.ne.s32.totalorder %s291, %s292
    %p306 = scmp.eq.s32.totalorder %s27, 6
    %p307 = por %p305, %p306
    %p309 = scmp.ne.s32.totalorder %s292, %s308
    %p310 = scmp.eq.s32.totalorder %s27, 0
    %p311 = por %p309, %p310
    %s312 = ssub.s32 %s21, %s28
    %p313 = scmp.eq.s32.totalorder %s312, 0
    %s315 = sadd.s32 %s314, 1
    %s316 = scalar_select %p313, %s314, %s315
    %p319 = pneg %p313
    %p320 = scmp.eq.s32.totalorder %s21, 6
    %p321 = por %p319, %p320
    %p322 = scmp.ne.s32.totalorder %s314, %s317
    %p323 = scmp.eq.s32.totalorder %s21, 0
    %p324 = por %p322, %p323
    %p325 = scmp.ne.s32.totalorder %s314, %s317
    %p326 = scmp.eq.s32.totalorder %s26, 6
    %p327 = por %p325, %p326
    %p328 = scmp.ne.s32.totalorder %s317, %s318
    %p329 = scmp.eq.s32.totalorder %s26, 0
    %p330 = por %p328, %p329
    %p331 = scmp.ne.s32.totalorder %s317, %s318
    %p332 = scmp.eq.s32.totalorder %s27, 6
    %p333 = por %p331, %p332
    %p335 = scmp.ne.s32.totalorder %s318, %s334
    %p336 = scmp.eq.s32.totalorder %s27, 0
    %p337 = por %p335, %p336
    %p338 = scmp.le.s32.totalorder 1, %s21
    %p339 = scmp.lt.s32.totalorder %s21, 8
    %p340 = pnand %p338, %p339
    %p341 = pneg %p340
    // Predicated region
    $region9: #{encoder_decoder_forward.4} parent=5 // pred_check
      _
    $region10: #{encoder_decoder_forward.4} parent=5 // pred_check_branch
      %343 = sbr.rel (%p340) target = $region12
    $region11: #{encoder_decoder_forward.4} parent=5 // pred_region
      %s344 = ssub.s32 %s21, 1
      // Predicated region
      $region13: #{encoder_decoder_forward.4} parent=11 // pred_check
        %p345 = pneg %p42
      $region14: #{encoder_decoder_forward.4} parent=11 // pred_check_branch
        %347 = sbr.rel (%p345) target = $region16
      $region15: #{encoder_decoder_forward.4} parent=11 // pred_region
        _
      $region16: #{encoder_decoder_forward.4} parent=11 // pred_fallthru
        _
      // Predicated region
      $region17: #{encoder_decoder_forward.4} parent=11 // pred_check
        %p348 = pneg %p89
      $region18: #{encoder_decoder_forward.4} parent=11 // pred_check_branch
        %350 = sbr.rel (%p348) target = $region20
      $region19: #{encoder_decoder_forward.4} parent=11 // pred_region
        _
      $region20: #{encoder_decoder_forward.4} parent=11 // pred_fallthru
        _
      // Predicated region
      $region21: #{encoder_decoder_forward.4} parent=11 // pred_check
        %p351 = pneg %p110
      $region22: #{encoder_decoder_forward.4} parent=11 // pred_check_branch
        %353 = sbr.rel (%p351) target = $region24
      $region23: #{encoder_decoder_forward.4} parent=11 // pred_region
        _
      $region24: #{encoder_decoder_forward.4} parent=11 // pred_fallthru
        _
      // Predicated region
      $region25: #{encoder_decoder_forward.4} parent=11 // pred_check
        %p354 = pneg %p131
      $region26: #{encoder_decoder_forward.4} parent=11 // pred_check_branch
        %356 = sbr.rel (%p354) target = $region28
      $region27: #{encoder_decoder_forward.4} parent=11 // pred_region
        _
      $region28: #{encoder_decoder_forward.4} parent=11 // pred_fallthru
        _
      // Predicated region
      $region29: #{encoder_decoder_forward.4} parent=11 // pred_check
        %p357 = pneg %p152
      $region30: #{encoder_decoder_forward.4} parent=11 // pred_check_branch
        %359 = sbr.rel (%p357) target = $region32
      $region31: #{encoder_decoder_forward.4} parent=11 // pred_region
        _
      $region32: #{encoder_decoder_forward.4} parent=11 // pred_fallthru
        _
      // Predicated region
      $region33: #{encoder_decoder_forward.4} parent=11 // pred_check
        %p360 = pneg %p173
      $region34: #{encoder_decoder_forward.4} parent=11 // pred_check_branch
        %362 = sbr.rel (%p360) target = $region36
      $region35: #{encoder_decoder_forward.4} parent=11 // pred_region
        _
      $region36: #{encoder_decoder_forward.4} parent=11 // pred_fallthru
        _
      // Predicated region
      $region37: #{encoder_decoder_forward.4} parent=11 // pred_check
        %p363 = pneg %p194
      $region38: #{encoder_decoder_forward.4} parent=11 // pred_check_branch
        %365 = sbr.rel (%p363) target = $region40
      $region39: #{encoder_decoder_forward.4} parent=11 // pred_region
        _
      $region40: #{encoder_decoder_forward.4} parent=11 // pred_fallthru
        _
      // Predicated region
      $region41: #{encoder_decoder_forward.4} parent=11 // pred_check
        %p366 = pneg %p215
      $region42: #{encoder_decoder_forward.4} parent=11 // pred_check_branch
        %368 = sbr.rel (%p366) target = $region44
      $region43: #{encoder_decoder_forward.4} parent=11 // pred_region
        _
      $region44: #{encoder_decoder_forward.4} parent=11 // pred_fallthru
        _
      // Predicated region
      $region45: #{encoder_decoder_forward.4} parent=11 // pred_check
        %p369 = pneg %p236
      $region46: #{encoder_decoder_forward.4} parent=11 // pred_check_branch
        %371 = sbr.rel (%p369) target = $region48
      $region47: #{encoder_decoder_forward.4} parent=11 // pred_region
        _
      $region48: #{encoder_decoder_forward.4} parent=11 // pred_fallthru
        _
      // Predicated region
      $region49: #{encoder_decoder_forward.4} parent=11 // pred_check
        %p372 = pneg %p257
      $region50: #{encoder_decoder_forward.4} parent=11 // pred_check_branch
        %374 = sbr.rel (%p372) target = $region52
      $region51: #{encoder_decoder_forward.4} parent=11 // pred_region
        _
      $region52: #{encoder_decoder_forward.4} parent=11 // pred_fallthru
        _
      // Predicated region
      $region53: #{encoder_decoder_forward.4} parent=11 // pred_check
        %p375 = pneg %p278
      $region54: #{encoder_decoder_forward.4} parent=11 // pred_check_branch
        %377 = sbr.rel (%p375) target = $region56
      $region55: #{encoder_decoder_forward.4} parent=11 // pred_region
        _
      $region56: #{encoder_decoder_forward.4} parent=11 // pred_fallthru
        _
    $region12: #{encoder_decoder_forward.4} parent=5 // pred_fallthru
      _
    %p378 = scmp.lt.s32.totalorder %s21, 7
    // Predicated region
    $region57: #{encoder_decoder_forward.4} parent=5 // pred_check
      %p379 = pneg %p378
    $region58: #{encoder_decoder_forward.4} parent=5 // pred_check_branch
      %381 = sbr.rel (%p379) target = $region60
    $region59: #{encoder_decoder_forward.4} parent=5 // pred_region
      // Predicated region
      $region61: #{encoder_decoder_forward.4} parent=59 // pred_check
        %p382 = pneg %p62
      $region62: #{encoder_decoder_forward.4} parent=59 // pred_check_branch
        %384 = sbr.rel (%p382) target = $region64
      $region63: #{encoder_decoder_forward.4} parent=59 // pred_region
        %p385 = scmp.lt.s32.totalorder %s21, 6
        %s386 = scalar_select %p385, %s21, 6
        %s387 = smul.addr %s386, 2
        %s388 = scalar_lea.vmem %s1, %s387
      $region64: #{encoder_decoder_forward.4} parent=59 // pred_fallthru
        _
    $region60: #{encoder_decoder_forward.4} parent=5 // pred_fallthru
      _
    %p389 = scmp.le.s32.totalorder 1, %s21
    %p390 = scmp.lt.s32.totalorder %s21, 8
    %p391 = pnand %p389, %p390
    %p392 = pneg %p391
    // Predicated region
    $region65: #{encoder_decoder_forward.4} parent=5 // pred_check
      _
    $region66: #{encoder_decoder_forward.4} parent=5 // pred_check_branch
      %394 = sbr.rel (%p391) target = $region68
    $region67: #{encoder_decoder_forward.4} parent=5 // pred_region
      %s395 = ssub.s32 %s21, 1
      %p396 = pneg %p42
      %p397 = pneg %p39
      %p398 = scmp.lt.s32.totalorder %s26, 6
      %s399 = scalar_select %p398, %s26, 6
      %s400 = smul.addr %s399, 2
      %s401 = scalar_lea.vmem %s1, %s400
      %p402 = pneg %p68
      %p403 = pneg %p65
      %p404 = pneg %p89
      %p405 = pneg %p86
      %p406 = pneg %p110
      %p407 = pneg %p107
      %p408 = pneg %p131
      %p409 = pneg %p128
      %p410 = pneg %p152
      %p411 = pneg %p149
      %p412 = pneg %p173
      %p413 = pneg %p170
      %p414 = pneg %p194
      %p415 = pneg %p191
      %p416 = pneg %p215
      %p417 = pneg %p212
      %p418 = pneg %p236
      %p419 = pneg %p233
      %p420 = pneg %p257
      %p421 = pneg %p254
      %p422 = pneg %p278
      %p423 = pneg %p275
      %p424 = pneg %p304
      %p425 = pneg %p301
      %p426 = scmp.lt.s32.totalorder %s26, 6
      %s427 = scalar_select %p426, %s26, 6
      %s428 = smul.addr %s427, 2
      %s429 = scalar_lea.vmem %s12, %s428
      %p430 = pneg %p330
      %p431 = pneg %p327
      %p432 = scmp.lt.s32.totalorder %s26, 6
      %s433 = scalar_select %p432, %s26, 6
      %s434 = smul.addr %s433, 2
      %s435 = scalar_lea.vmem %s13, %s434
      %p436 = scmp.lt.s32.totalorder %s26, 6
      %s437 = scalar_select %p436, %s26, 6
      %s438 = smul.addr %s437, 2
      %s439 = scalar_lea.vmem %s1, %s438
      %p440 = scmp.lt.s32.totalorder %s26, 6
      %s441 = scalar_select %p440, %s26, 6
      %s442 = smul.addr %s441, 2
      %s443 = scalar_lea.vmem %s12, %s442
      %p444 = scmp.lt.s32.totalorder %s26, 6
      %s445 = scalar_select %p444, %s26, 6
      %s446 = smul.addr %s445, 2
      %s447 = scalar_lea.vmem %s13, %s446
      %v448 = vld [vmem:[%s0] sm:$0xff]
      %v449 = vld [vmem:[%s0 + $0x8] sm:$0xff]
      %v450 = vld [vmem:[%s0 + $0x10] sm:$0xff]
      %v451 = vld [vmem:[%s0 + $0x18] sm:$0xff]
      %p452 = scmp.eq.s32.totalorder %s26, 0
      // Predicated region
      $region69: #{encoder_decoder_forward.4} parent=67 // pred_check
        %p453 = pneg %p452
      $region70: #{encoder_decoder_forward.4} parent=67 // pred_check_branch
        %455 = sbr.rel (%p453) target = $region72
      $region71: #{encoder_decoder_forward.4} parent=67 // pred_region
        %v456 = vld [vmem:[%s2] sm:$0xff]
        %v457 = vld [vmem:[%s2 + $0x8] sm:$0xff]
        %v458 = vld [vmem:[%s2 + $0x10] sm:$0xff]
        %v459 = vld [vmem:[%s2 + $0x18] sm:$0xff]
        %v460 = vld [vmem:[%s2 + $0x20] sm:$0xff]
        %v461 = vld [vmem:[%s2 + $0x28] sm:$0xff]
        %v462 = vld [vmem:[%s2 + $0x30] sm:$0xff]
        %v463 = vld [vmem:[%s2 + $0x38] sm:$0xff]
        %v464 = vld [vmem:[%s3] sm:$0x1]
        %v466 = vlaneseq
        %v467 = vshrl.u32 %v466, 7
        %v468 = vsub.s32 0, %v467
        %v469 = vrot.slane %v464, %v468
        %vm471 = vcmask 523264
        %v473 = vsel %vm471, %v448, 0
        %v476 = vsel %vm471, %v449, 0
        %v479 = vsel %vm471, %v450, 0
        %v482 = vsel %vm471, %v451, 0
        %484 = vmatprep.subr.mxu0 0.0
        %485 = vmatpush1.msra.mxu0 %v456
        %486 = vmatprep.subr.mxu0 0.0
        %487 = vmatpush1.msra.mxu0 %v457
        %488 = vmatprep.subr.mxu0 0.0
        %489 = vmatpush1.msra.mxu0 %v458
        %490 = vmatprep.subr.mxu0 0.0
        %491 = vmatpush1.msra.mxu0 %v459
        %492 = vmatprep.subr.mxu0 0.0
        %493 = vmatpush1.msra.mxu0 %v460
        %494 = vmatprep.subr.mxu0 0.0
        %495 = vmatpush1.msra.mxu0 %v461
        %496 = vmatprep.subr.mxu0 0.0
        %497 = vmatpush1.msra.mxu0 %v462
        %498 = vmatprep.subr.mxu0 0.0
        %499 = vmatpush1.msra.mxu0 %v463
        %500 = vmatprep.subr.mxu0 0.0
        %501 = vmatpush1.msra.mxu0 0.0
        %502 = vmatprep.subr.mxu0 0.0
        %503 = vmatpush1.msra.mxu0 0.0
        %504 = vmatprep.subr.mxu0 0.0
        %505 = vmatpush1.msra.mxu0 0.0
        %506 = vmatprep.subr.mxu0 0.0
        %507 = vmatpush1.msra.mxu0 0.0
        %508 = vmatprep.subr.mxu0 0.0
        %509 = vmatpush1.msra.mxu0 0.0
        %510 = vmatprep.subr.mxu0 0.0
        %511 = vmatpush1.msra.mxu0 0.0
        %512 = vmatprep.subr.mxu0 0.0
        %513 = vmatpush1.msra.mxu0 0.0
        %514 = vmatprep.subr.mxu0 0.0
        %515 = vmatpush1.msra.mxu0 0.0
        %516 = vmatprep.subr.mxu0 0.0
        %517 = vmatpush1.msra.mxu0 0.0
        %518 = vmatprep.subr.mxu0 0.0
        %519 = vmatpush1.msra.mxu0 0.0
        %520 = vmatprep.subr.mxu0 0.0
        %521 = vmatpush1.msra.mxu0 0.0
        %522 = vmatprep.subr.mxu0 0.0
        %523 = vmatpush1.msra.mxu0 0.0
        %524 = vmatprep.subr.mxu0 0.0
        %525 = vmatpush1.msra.mxu0 0.0
        %526 = vmatprep.subr.mxu0 0.0
        %527 = vmatpush1.msra.mxu0 0.0
        %528 = vmatprep.subr.mxu0 0.0
        %529 = vmatpush1.msra.mxu0 0.0
        %530 = vmatprep.subr.mxu0 0.0
        %531 = vmatpush1.msra.mxu0 0.0
        %532 = vmatprep.subr.mxu0 0.0
        %533 = vmatpush1.msra.mxu0 0.0
        %534 = vmatprep.subr.mxu0 0.0
        %535 = vmatpush1.msra.mxu0 0.0
        %536 = vmatprep.subr.mxu0 0.0
        %537 = vmatpush1.msra.mxu0 0.0
        %538 = vmatprep.subr.mxu0 0.0
        %539 = vmatpush1.msra.mxu0 0.0
        %540 = vmatprep.subr.mxu0 0.0
        %541 = vmatpush1.msra.mxu0 0.0
        %542 = vmatprep.subr.mxu0 0.0
        %543 = vmatpush1.msra.mxu0 0.0
        %544 = vmatprep.subr.mxu0 0.0
        %545 = vmatpush1.msra.mxu0 0.0
        %546 = vmatprep.subr.mxu0 0.0
        %547 = vmatpush1.msra.mxu0 0.0
        %548 = vmatprep.mubr.f32.mxu0 0.0
        %549 = vmatmul.mubr.f32.gmra.mrb[0].mxu0 %v473
        %v550 = vpop.f32.mrb[0].mxu0
        %v551 = vadd.f32 %v469, %v550
        %v552 = vpop.f32.mrb[0].mxu0
        %553 = vmatprep.mubr.f32.mxu0 0.0
        %554 = vmatmul.mubr.f32.gmra.mrb[0].mxu0 %v476
        %v555 = vpop.f32.mrb[0].mxu0
        %v556 = vadd.f32 %v469, %v555
        %v557 = vpop.f32.mrb[0].mxu0
        %558 = vmatprep.mubr.f32.mxu0 0.0
        %559 = vmatmul.mubr.f32.gmra.mrb[0].mxu0 %v479
        %v560 = vpop.f32.mrb[0].mxu0
        %v561 = vadd.f32 %v469, %v560
        %v562 = vpop.f32.mrb[0].mxu0
        %563 = vmatprep.mubr.f32.mxu0 0.0
        %564 = vmatmul.mubr.f32.gmra.mrb[0].mxu0 %v482
        %v565 = vpop.f32.mrb[0].mxu0
        %v566 = vadd.f32 %v469, %v565
        %v567 = vpop.f32.mrb[0].mxu0
        %568 = vdwg.mxu0
        %569 = vst [vmem:[#allocation2] sm:$0xff] %v551
        %570 = vst [vmem:[#allocation2 + $0x8] sm:$0xff] %v556
        %571 = vst [vmem:[#allocation2 + $0x10] sm:$0xff] %v561
        %572 = vst [vmem:[#allocation2 + $0x18] sm:$0xff] %v566
        %v573 = vsel %vm471, %v448, 0.0
        %v574 = vsel %vm471, %v449, 0.0
        %v575 = vadd.f32 %v573, %v574
        %v576 = vrot.slane %v575, 4
        %v577 = vadd.f32 %v575, %v576
        %v578 = vrot.slane %v577, 2
        %v579 = vadd.f32 %v577, %v578
        %v580 = vrot.slane %v579, 1
        %v581 = vadd.f32 %v579, %v580
        %v582 = vsel %vm471, %v450, 0.0
        %v583 = vsel %vm471, %v451, 0.0
        %v584 = vadd.f32 %v582, %v583
        %v585 = vrot.slane %v584, 4
        %v586 = vadd.f32 %v584, %v585
        %v587 = vrot.slane %v586, 2
        %v588 = vadd.f32 %v586, %v587
        %v589 = vrot.slane %v588, 1
        %v590 = vadd.f32 %v588, %v589
        %v591 = vrcp.pop 16.0
        %v592 = vmul.f32 %v581, %v591
        %v593 = vmul.f32 %v590, %v591
        %v594 = vld [vmem:[%s8] sm:$0xff]
        %v595 = vld [vmem:[%s8 + $0x8] sm:$0xff]
        %v596 = vld [vmem:[%s8 + $0x10] sm:$0xff]
        %v597 = vld [vmem:[%s8 + $0x18] sm:$0xff]
        %v598 = vld [vmem:[%s8 + $0x20] sm:$0xff]
        %v599 = vld [vmem:[%s8 + $0x28] sm:$0xff]
        %v600 = vld [vmem:[%s8 + $0x30] sm:$0xff]
        %v601 = vld [vmem:[%s8 + $0x38] sm:$0xff]
        %v602 = vld [vmem:[%s8 + $0x40] sm:$0xff]
        %v603 = vld [vmem:[%s8 + $0x48] sm:$0xff]
        %v604 = vld [vmem:[%s8 + $0x50] sm:$0xff]
        %v605 = vld [vmem:[%s8 + $0x58] sm:$0xff]
        %v606 = vld [vmem:[%s8 + $0x60] sm:$0xff]
        %v607 = vld [vmem:[%s8 + $0x68] sm:$0xff]
        %v608 = vld [vmem:[%s8 + $0x70] sm:$0xff]
        %v609 = vld [vmem:[%s8 + $0x78] sm:$0xff]
        %v610 = vld [vmem:[%s9] sm:$0x3]
        %v612 = vlaneseq
        %v613 = vshrl.u32 %v612, 7
        %v614 = vsub.s32 0, %v613
        %v615 = vrot.slane %v610, %v614
        %v616 = vlaneseq
        %v617 = vshrl.u32 %v616, 7
        %v618 = vsub.s32 1, %v617
        %v619 = vrot.slane %v610, %v618
        %vm624 = vcmask 1041409
        %v625 = vsel %vm624, %v593, %v592
        %v626 = vsel %vm471, %v625, 0
        %628 = vmatprep.subr.mxu0 %v595
        %629 = vmatpush1.msra.mxu0 %v594
        %630 = vmatprep.subr.mxu0 %v597
        %631 = vmatpush1.msra.mxu0 %v596
        %632 = vmatprep.subr.mxu0 %v599
        %633 = vmatpush1.msra.mxu0 %v598
        %634 = vmatprep.subr.mxu0 %v601
        %635 = vmatpush1.msra.mxu0 %v600
        %636 = vmatprep.subr.mxu0 %v603
        %637 = vmatpush1.msra.mxu0 %v602
        %638 = vmatprep.subr.mxu0 %v605
        %639 = vmatpush1.msra.mxu0 %v604
        %640 = vmatprep.subr.mxu0 %v607
        %641 = vmatpush1.msra.mxu0 %v606
        %642 = vmatprep.subr.mxu0 %v609
        %643 = vmatpush1.msra.mxu0 %v608
        %644 = vmatprep.subr.mxu0 0.0
        %645 = vmatpush1.msra.mxu0 0.0
        %646 = vmatprep.subr.mxu0 0.0
        %647 = vmatpush1.msra.mxu0 0.0
        %648 = vmatprep.subr.mxu0 0.0
        %649 = vmatpush1.msra.mxu0 0.0
        %650 = vmatprep.subr.mxu0 0.0
        %651 = vmatpush1.msra.mxu0 0.0
        %652 = vmatprep.subr.mxu0 0.0
        %653 = vmatpush1.msra.mxu0 0.0
        %654 = vmatprep.subr.mxu0 0.0
        %655 = vmatpush1.msra.mxu0 0.0
        %656 = vmatprep.subr.mxu0 0.0
        %657 = vmatpush1.msra.mxu0 0.0
        %658 = vmatprep.subr.mxu0 0.0
        %659 = vmatpush1.msra.mxu0 0.0
        %660 = vmatprep.subr.mxu0 0.0
        %661 = vmatpush1.msra.mxu0 0.0
        %662 = vmatprep.subr.mxu0 0.0
        %663 = vmatpush1.msra.mxu0 0.0
        %664 = vmatprep.subr.mxu0 0.0
        %665 = vmatpush1.msra.mxu0 0.0
        %666 = vmatprep.subr.mxu0 0.0
        %667 = vmatpush1.msra.mxu0 0.0
        %668 = vmatprep.subr.mxu0 0.0
        %669 = vmatpush1.msra.mxu0 0.0
        %670 = vmatprep.subr.mxu0 0.0
        %671 = vmatpush1.msra.mxu0 0.0
        %672 = vmatprep.subr.mxu0 0.0
        %673 = vmatpush1.msra.mxu0 0.0
        %674 = vmatprep.subr.mxu0 0.0
        %675 = vmatpush1.msra.mxu0 0.0
        %676 = vmatprep.subr.mxu0 0.0
        %677 = vmatpush1.msra.mxu0 0.0
        %678 = vmatprep.subr.mxu0 0.0
        %679 = vmatpush1.msra.mxu0 0.0
        %680 = vmatprep.subr.mxu0 0.0
        %681 = vmatpush1.msra.mxu0 0.0
        %682 = vmatprep.subr.mxu0 0.0
        %683 = vmatpush1.msra.mxu0 0.0
        %684 = vmatprep.subr.mxu0 0.0
        %685 = vmatpush1.msra.mxu0 0.0
        %686 = vmatprep.subr.mxu0 0.0
        %687 = vmatpush1.msra.mxu0 0.0
        %688 = vmatprep.subr.mxu0 0.0
        %689 = vmatpush1.msra.mxu0 0.0
        %690 = vmatprep.subr.mxu0 0.0
        %691 = vmatpush1.msra.mxu0 0.0
        %692 = vmatprep.mubr.f32.mxu0 0.0
        %693 = vmatmul.mubr.f32.gmra.mrb[0].mxu0 %v626
        %v694 = vpop.f32.mrb[0].mxu0
        %v695 = vadd.f32 %v615, %v694
        %v696 = vpop.f32.mrb[0].mxu0
        %v697 = vadd.f32 %v619, %v696
        %698 = vdwg.mxu0
        %699 = vst [vmem:[#allocation3] sm:$0x3] %v695
        %700 = vst [vmem:[#allocation4] sm:$0x3] %v697
      $region72: #{encoder_decoder_forward.4} parent=67 // pred_fallthru
        _
      %v701 = vld [vmem:[#allocation3] sm:$0x3]
      %v702 = vld [vmem:[#allocation4] sm:$0x3]
      %v703 = vld [vmem:[%s4] sm:$0xff]
      %v704 = vld [vmem:[%s4 + $0x8] sm:$0xff]
      %v705 = vld [vmem:[%s4 + $0x10] sm:$0xff]
      %v706 = vld [vmem:[%s4 + $0x18] sm:$0xff]
      %v707 = vld [vmem:[%s4 + $0x20] sm:$0xff]
      %v708 = vld [vmem:[%s4 + $0x28] sm:$0xff]
      %v709 = vld [vmem:[%s4 + $0x30] sm:$0xff]
      %v710 = vld [vmem:[%s4 + $0x38] sm:$0xff]
      %v711 = vld [vmem:[%s4 + $0x40] sm:$0xff]
      %v712 = vld [vmem:[%s4 + $0x48] sm:$0xff]
      %v713 = vld [vmem:[%s4 + $0x50] sm:$0xff]
      %v714 = vld [vmem:[%s4 + $0x58] sm:$0xff]
      %v715 = vld [vmem:[%s4 + $0x60] sm:$0xff]
      %v716 = vld [vmem:[%s4 + $0x68] sm:$0xff]
      %v717 = vld [vmem:[%s4 + $0x70] sm:$0xff]
      %v718 = vld [vmem:[%s4 + $0x78] sm:$0xff]
      %v719 = vld [vmem:[%s5] sm:$0x1]
      %v721 = vlaneseq
      %v722 = vshrl.u32 %v721, 7
      %v723 = vsub.s32 0, %v722
      %v724 = vrot.slane %v719, %v723
      %726 = vmatprep.subr.mxu0 0.0
      %727 = vmatpush1.msra.mxu0 %v703
      %728 = vmatprep.subr.mxu0 0.0
      %729 = vmatpush1.msra.mxu0 %v704
      %730 = vmatprep.subr.mxu0 0.0
      %731 = vmatpush1.msra.mxu0 %v705
      %732 = vmatprep.subr.mxu0 0.0
      %733 = vmatpush1.msra.mxu0 %v706
      %734 = vmatprep.subr.mxu0 0.0
      %735 = vmatpush1.msra.mxu0 %v707
      %736 = vmatprep.subr.mxu0 0.0
      %737 = vmatpush1.msra.mxu0 %v708
      %738 = vmatprep.subr.mxu0 0.0
      %739 = vmatpush1.msra.mxu0 %v709
      %740 = vmatprep.subr.mxu0 0.0
      %741 = vmatpush1.msra.mxu0 %v710
      %742 = vmatprep.subr.mxu0 0.0
      %743 = vmatpush1.msra.mxu0 %v711
      %744 = vmatprep.subr.mxu0 0.0
      %745 = vmatpush1.msra.mxu0 %v712
      %746 = vmatprep.subr.mxu0 0.0
      %747 = vmatpush1.msra.mxu0 %v713
      %748 = vmatprep.subr.mxu0 0.0
      %749 = vmatpush1.msra.mxu0 %v714
      %750 = vmatprep.subr.mxu0 0.0
      %751 = vmatpush1.msra.mxu0 %v715
      %752 = vmatprep.subr.mxu0 0.0
      %753 = vmatpush1.msra.mxu0 %v716
      %754 = vmatprep.subr.mxu0 0.0
      %755 = vmatpush1.msra.mxu0 %v717
      %756 = vmatprep.subr.mxu0 0.0
      %757 = vmatpush1.msra.mxu0 %v718
      %758 = vmatprep.subr.mxu0 0.0
      %759 = vmatpush1.msra.mxu0 0.0
      %760 = vmatprep.subr.mxu0 0.0
      %761 = vmatpush1.msra.mxu0 0.0
      %762 = vmatprep.subr.mxu0 0.0
      %763 = vmatpush1.msra.mxu0 0.0
      %764 = vmatprep.subr.mxu0 0.0
      %765 = vmatpush1.msra.mxu0 0.0
      %766 = vmatprep.subr.mxu0 0.0
      %767 = vmatpush1.msra.mxu0 0.0
      %768 = vmatprep.subr.mxu0 0.0
      %769 = vmatpush1.msra.mxu0 0.0
      %770 = vmatprep.subr.mxu0 0.0
      %771 = vmatpush1.msra.mxu0 0.0
      %772 = vmatprep.subr.mxu0 0.0
      %773 = vmatpush1.msra.mxu0 0.0
      %774 = vmatprep.subr.mxu0 0.0
      %775 = vmatpush1.msra.mxu0 0.0
      %776 = vmatprep.subr.mxu0 0.0
      %777 = vmatpush1.msra.mxu0 0.0
      %778 = vmatprep.subr.mxu0 0.0
      %779 = vmatpush1.msra.mxu0 0.0
      %780 = vmatprep.subr.mxu0 0.0
      %781 = vmatpush1.msra.mxu0 0.0
      %782 = vmatprep.subr.mxu0 0.0
      %783 = vmatpush1.msra.mxu0 0.0
      %784 = vmatprep.subr.mxu0 0.0
      %785 = vmatpush1.msra.mxu0 0.0
      %786 = vmatprep.subr.mxu0 0.0
      %787 = vmatpush1.msra.mxu0 0.0
      %788 = vmatprep.subr.mxu0 0.0
      %789 = vmatpush1.msra.mxu0 0.0
      %790 = vmatprep.mubr.f32.mxu0 0.0
      %791 = vmatmul.mubr.f32.gmra.mrb[0].mxu0 %v701
      %v792 = vpop.f32.mrb[0].mxu0
      %v793 = vadd.f32 %v724, %v792
      %v794 = vpop.f32.mrb[0].mxu0
      %795 = vdwg.mxu0
      %v796 = vld [vmem:[#allocation2] sm:$0xff]
      %v797 = vld [vmem:[#allocation2 + $0x8] sm:$0xff]
      %v798 = vld [vmem:[#allocation2 + $0x10] sm:$0xff]
      %v799 = vld [vmem:[#allocation2 + $0x18] sm:$0xff]
      %v802 = vunpack.c.l.s4 1966171168
      %v803 = vunpack.c.0.s8 %v802
      %v804 = vlaneseq
      %v805 = vshrl.u32 %v804, 7
      %v806 = vsub.s32 %v803, %v805
      %v807 = vrot.slane %v793, %v806
      %v808 = vcombine.high %v807, %v807
      %v810 = vunpack.c.l.s4 1966171168
      %v811 = vunpack.c.0.s8 %v810
      %v812 = vlaneseq
      %v813 = vshrl.u32 %v812, 7
      %v814 = vsub.s32 %v811, %v813
      %v815 = vrot.slane %v807, %v814
      %v817 = vunpack.c.l.s4 1966171168
      %v818 = vunpack.c.0.s8 %v817
      %v819 = vlaneseq
      %v820 = vshrl.u32 %v819, 7
      %v821 = vsub.s32 %v818, %v820
      %v822 = vrot.slane %v808, %v821
      %v823 = vlaneseq
      %v824 = vshrl.u32 %v823, 7
      %v825 = vsub.s32 0, %v824
      %v826 = vrot.slane %v815, %v825
      %v827 = vlaneseq
      %v828 = vshrl.u32 %v827, 7
      %v829 = vsub.s32 0, %v828
      %v830 = vrot.slane %v822, %v829
      %v833 = vadd.f32 %v796, %v826
      %v834 = vadd.f32 %v797, %v826
      %v835 = vadd.f32 %v798, %v830
      %v836 = vadd.f32 %v799, %v830
      %v837 = vtanh.pop %v833
      %v838 = vtanh.pop %v834
      %v839 = vtanh.pop %v835
      %v840 = vtanh.pop %v836
      %v841 = vld [vmem:[%s6] sm:$0x1]
      %v843 = vlaneseq
      %v844 = vshrl.u32 %v843, 7
      %v845 = vsub.s32 0, %v844
      %v846 = vrot.slane %v841, %v845
      %v848 = vmul.f32 %v837, %v846
      %v849 = vmul.f32 %v838, %v846
      %v850 = vmul.f32 %v839, %v846
      %v851 = vmul.f32 %v840, %v846
      %852 = vadd.xlane.f32.xlu0 %v848
      %v853 = vpop.xlane.xlu0 %852
      %854 = vadd.xlane.f32.xlu0 %v849
      %v855 = vpop.xlane.xlu0 %854
      %856 = vadd.xlane.f32.xlu0 %v850
      %v857 = vpop.xlane.xlu0 %856
      %858 = vadd.xlane.f32.xlu0 %v851
      %v859 = vpop.xlane.xlu0 %858
      %s860 = sld [smem:[#allocation5]]
      %v861 = vstv %s860
      %v862 = vadd.f32 %v853, %v861
      %v863 = vadd.f32 %v855, %v861
      %v864 = vadd.f32 %v857, %v861
      %v865 = vadd.f32 %v859, %v861
      %v870 = vlaneseq
      %v871 = vand.u32 %v870, 127
      %v872 = vlaneseq
      %v873 = vshrl.u32 %v872, 7
      %v874 = vsub.s32 %v871, %v873
      %v875 = vrot.slane %v862, %v874
      %v876 = vadd.s32 %v871, 4294967288
      %v877 = vlaneseq
      %v878 = vshrl.u32 %v877, 7
      %v879 = vsub.s32 %v876, %v878
      %v880 = vrot.slane %v863, %v879
      %vm881 = vcmask 130112
      %v882 = vsel %vm881, %v880, %v875
      %v883 = vlaneseq
      %v884 = vshrl.u32 %v883, 7
      %v885 = vsub.s32 %v871, %v884
      %v886 = vrot.slane %v864, %v885
      %v887 = vlaneseq
      %v888 = vshrl.u32 %v887, 7
      %v889 = vsub.s32 %v876, %v888
      %v890 = vrot.slane %v865, %v889
      %v891 = vsel %vm881, %v890, %v886
      %vm892 = vcmask 1041409
      %v893 = vsel %vm892, %v891, %v882
      %vm895 = vcmask 123904
      %v896 = vsel %vm895, %v893, -inf
      %897 = vmax.xlane.f32.xlu0 %v896
      %v898 = vpop.xlane.xlu0 %897
      %v900 = vlaneseq
      %v901 = vshrl.u32 %v900, 7
      %v902 = vsub.s32 0, %v901
      %v903 = vrot.slane %v898, %v902
      %v904 = vlaneseq
      %v905 = vshrl.u32 %v904, 7
      %v906 = vsub.s32 1, %v905
      %v907 = vrot.slane %v898, %v906
      %v910 = vsub.f32 %v862, %v903
      %v911 = vsub.f32 %v863, %v903
      %v912 = vsub.f32 %v864, %v907
      %v913 = vsub.f32 %v865, %v907
      %v914 = vmul.f32 %v910, 1.442695
      %v915 = vpow.pop %v914
      %v916 = vmul.f32 %v911, 1.442695
      %v917 = vpow.pop %v916
      %v918 = vmul.f32 %v912, 1.442695
      %v919 = vpow.pop %v918
      %v920 = vmul.f32 %v913, 1.442695
      %v921 = vpow.pop %v920
      %926 = vset.pattern.permute.xlu0 0
      %927 = vperm.xlu0 %926, %v915
      %v928 = vpop.permute.xlu0 %927
      %929 = vset.pattern.permute.xlu0 0
      %930 = vperm.xlu0 %929, %v917
      %v931 = vpop.permute.xlu0 %930
      %932 = vset.pattern.permute.xlu0 0
      %933 = vperm.xlu0 %932, %v919
      %v934 = vpop.permute.xlu0 %933
      %935 = vset.pattern.permute.xlu0 0
      %936 = vperm.xlu0 %935, %v921
      %v937 = vpop.permute.xlu0 %936
      %v938 = vlaneseq
      %v939 = vshrl.u32 %v938, 7
      %v940 = vsub.s32 %v871, %v939
      %v941 = vrot.slane %v928, %v940
      %v942 = vlaneseq
      %v943 = vshrl.u32 %v942, 7
      %v944 = vsub.s32 %v876, %v943
      %v945 = vrot.slane %v931, %v944
      %v946 = vsel %vm881, %v945, %v941
      %v947 = vlaneseq
      %v948 = vshrl.u32 %v947, 7
      %v949 = vsub.s32 %v871, %v948
      %v950 = vrot.slane %v934, %v949
      %v951 = vlaneseq
      %v952 = vshrl.u32 %v951, 7
      %v953 = vsub.s32 %v876, %v952
      %v954 = vrot.slane %v937, %v953
      %v955 = vsel %vm881, %v954, %v950
      %v956 = vsel %vm892, %v955, %v946
      %v958 = vsel %vm895, %v956, 0.0
      %959 = vadd.xlane.f32.xlu0 %v958
      %v960 = vpop.xlane.xlu0 %959
      %v961 = vrcp.pop %v960
      %v963 = vlaneseq
      %v964 = vshrl.u32 %v963, 7
      %v965 = vsub.s32 0, %v964
      %v966 = vrot.slane %v961, %v965
      %v967 = vlaneseq
      %v968 = vshrl.u32 %v967, 7
      %v969 = vsub.s32 1, %v968
      %v970 = vrot.slane %v961, %v969
      %v973 = vmul.f32 %v915, %v966
      %v974 = vmul.f32 %v917, %v966
      %v975 = vmul.f32 %v919, %v970
      %v976 = vmul.f32 %v921, %v970
      %978 = vset.pattern.permute.xlu0 0
      %979 = vperm.xlu0 %978, %v973
      %v980 = vpop.permute.xlu0 %979
      %983 = vset.pattern.permute.xlu0 0
      %984 = vperm.xlu0 %983, %v974
      %v985 = vpop.permute.xlu0 %984
      %988 = vset.pattern.permute.xlu0 0
      %989 = vperm.xlu0 %988, %v975
      %v990 = vpop.permute.xlu0 %989
      %993 = vset.pattern.permute.xlu0 0
      %994 = vperm.xlu0 %993, %v976
      %v995 = vpop.permute.xlu0 %994
      %v997 = vmul.f32 %v448, %v980
      %v998 = vmul.f32 %v449, %v985
      %v999 = vmul.f32 %v450, %v990
      %v1000 = vmul.f32 %v451, %v995
      %vm1001 = vcmask 523264
      %v1002 = vsel %vm1001, %v997, 0.0
      %v1003 = vsel %vm1001, %v998, 0.0
      %v1004 = vadd.f32 %v1002, %v1003
      %v1005 = vrot.slane %v1004, 4
      %v1006 = vadd.f32 %v1004, %v1005
      %v1007 = vrot.slane %v1006, 2
      %v1008 = vadd.f32 %v1006, %v1007
      %v1009 = vrot.slane %v1008, 1
      %v1010 = vadd.f32 %v1008, %v1009
      %v1011 = vsel %vm1001, %v999, 0.0
      %v1012 = vsel %vm1001, %v1000, 0.0
      %v1013 = vadd.f32 %v1011, %v1012
      %v1014 = vrot.slane %v1013, 4
      %v1015 = vadd.f32 %v1013, %v1014
      %v1016 = vrot.slane %v1015, 2
      %v1017 = vadd.f32 %v1015, %v1016
      %v1018 = vrot.slane %v1017, 1
      %v1019 = vadd.f32 %v1017, %v1018
      %v1020 = vld [vmem:[%s439] sm:$0x3]
      %v1023 = vsel %vm892, %v1019, %v1010
      %1024 = vrot.lane.b32.xlu0 %v1023, 32
      %v1025 = vpop.permute.xlu0 %1024
      %1028 = vrot.lane.b32.xlu0 %v701, 96
      %v1029 = vpop.permute.xlu0 %1028
      %vm1031 = vcmask 261120
      %v1032 = vsel %vm1031, %v1020, %v1025
      %vm1033 = vcmask 785408
      %v1034 = vsel %vm1033, %v1032, %v1029
      %v1035 = vld [vmem:[%s10] sm:$0xff]
      %v1036 = vld [vmem:[%s10 + $0x8] sm:$0xff]
      %v1037 = vld [vmem:[%s10 + $0x10] sm:$0xff]
      %v1038 = vld [vmem:[%s10 + $0x18] sm:$0xff]
      %v1039 = vld [vmem:[%s10 + $0x20] sm:$0xff]
      %v1040 = vld [vmem:[%s10 + $0x28] sm:$0xff]
      %v1041 = vld [vmem:[%s10 + $0x30] sm:$0xff]
      %v1042 = vld [vmem:[%s10 + $0x38] sm:$0xff]
      %v1043 = vld [vmem:[%s10 + $0x40] sm:$0xff]
      %v1044 = vld [vmem:[%s10 + $0x48] sm:$0xff]
      %v1045 = vld [vmem:[%s10 + $0x50] sm:$0xff]
      %v1046 = vld [vmem:[%s10 + $0x58] sm:$0xff]
      %v1047 = vld [vmem:[%s10 + $0x60] sm:$0xff]
      %v1048 = vld [vmem:[%s10 + $0x68] sm:$0xff]
      %v1049 = vld [vmem:[%s10 + $0x70] sm:$0xff]
      %v1050 = vld [vmem:[%s10 + $0x78] sm:$0xff]
      %v1051 = vld [vmem:[%s10 + $0x80] sm:$0xff]
      %v1052 = vld [vmem:[%s10 + $0x88] sm:$0xff]
      %v1053 = vld [vmem:[%s10 + $0x90] sm:$0xff]
      %v1054 = vld [vmem:[%s10 + $0x98] sm:$0xff]
      %v1055 = vld [vmem:[%s10 + $0xa0] sm:$0xff]
      %v1056 = vld [vmem:[%s10 + $0xa8] sm:$0xff]
      %v1057 = vld [vmem:[%s10 + $0xb0] sm:$0xff]
      %v1058 = vld [vmem:[%s10 + $0xb8] sm:$0xff]
      %v1059 = vld [vmem:[%s10 + $0xc0] sm:$0xff]
      %v1060 = vld [vmem:[%s10 + $0xc8] sm:$0xff]
      %v1061 = vld [vmem:[%s10 + $0xd0] sm:$0xff]
      %v1062 = vld [vmem:[%s10 + $0xd8] sm:$0xff]
      %v1063 = vld [vmem:[%s10 + $0xe0] sm:$0xff]
      %v1064 = vld [vmem:[%s10 + $0xe8] sm:$0xff]
      %v1065 = vld [vmem:[%s10 + $0xf0] sm:$0xff]
      %v1066 = vld [vmem:[%s10 + $0xf8] sm:$0xff]
      %v1067 = vld [vmem:[%s10 + $0x100] sm:$0xff]
      %v1068 = vld [vmem:[%s10 + $0x108] sm:$0xff]
      %v1069 = vld [vmem:[%s10 + $0x110] sm:$0xff]
      %v1070 = vld [vmem:[%s10 + $0x118] sm:$0xff]
      %v1071 = vld [vmem:[%s10 + $0x120] sm:$0xff]
      %v1072 = vld [vmem:[%s10 + $0x128] sm:$0xff]
      %v1073 = vld [vmem:[%s10 + $0x130] sm:$0xff]
      %v1074 = vld [vmem:[%s10 + $0x138] sm:$0xff]
      %v1075 = vld [vmem:[%s10 + $0x140] sm:$0xff]
      %v1076 = vld [vmem:[%s10 + $0x148] sm:$0xff]
      %v1077 = vld [vmem:[%s10 + $0x150] sm:$0xff]
      %v1078 = vld [vmem:[%s10 + $0x158] sm:$0xff]
      %v1079 = vld [vmem:[%s10 + $0x160] sm:$0xff]
      %v1080 = vld [vmem:[%s10 + $0x168] sm:$0xff]
      %v1081 = vld [vmem:[%s10 + $0x170] sm:$0xff]
      %v1082 = vld [vmem:[%s10 + $0x178] sm:$0xff]
      %v1083 = vld [vmem:[%s10 + $0x180] sm:$0xff]
      %v1084 = vld [vmem:[%s10 + $0x188] sm:$0xff]
      %v1085 = vld [vmem:[%s10 + $0x190] sm:$0xff]
      %v1086 = vld [vmem:[%s10 + $0x198] sm:$0xff]
      %v1087 = vld [vmem:[%s10 + $0x1a0] sm:$0xff]
      %v1088 = vld [vmem:[%s10 + $0x1a8] sm:$0xff]
      %v1089 = vld [vmem:[%s10 + $0x1b0] sm:$0xff]
      %v1090 = vld [vmem:[%s10 + $0x1b8] sm:$0xff]
      %v1091 = vld [vmem:[%s10 + $0x1c0] sm:$0xff]
      %v1092 = vld [vmem:[%s10 + $0x1c8] sm:$0xff]
      %v1093 = vld [vmem:[%s10 + $0x1d0] sm:$0xff]
      %v1094 = vld [vmem:[%s10 + $0x1d8] sm:$0xff]
      %v1095 = vld [vmem:[%s10 + $0x1e0] sm:$0xff]
      %v1096 = vld [vmem:[%s10 + $0x1e8] sm:$0xff]
      %v1097 = vld [vmem:[%s10 + $0x1f0] sm:$0xff]
      %v1098 = vld [vmem:[%s10 + $0x1f8] sm:$0xff]
      %v1099 = vld [vmem:[%s10 + $0x200] sm:$0xff]
      %v1100 = vld [vmem:[%s10 + $0x208] sm:$0xff]
      %v1101 = vld [vmem:[%s10 + $0x210] sm:$0xff]
      %v1102 = vld [vmem:[%s10 + $0x218] sm:$0xff]
      %v1103 = vld [vmem:[%s10 + $0x220] sm:$0xff]
      %v1104 = vld [vmem:[%s10 + $0x228] sm:$0xff]
      %v1105 = vld [vmem:[%s10 + $0x230] sm:$0xff]
      %v1106 = vld [vmem:[%s10 + $0x238] sm:$0xff]
      %v1107 = vld [vmem:[%s10 + $0x240] sm:$0xff]
      %v1108 = vld [vmem:[%s10 + $0x248] sm:$0xff]
      %v1109 = vld [vmem:[%s10 + $0x250] sm:$0xff]
      %v1110 = vld [vmem:[%s10 + $0x258] sm:$0xff]
      %v1111 = vld [vmem:[%s10 + $0x260] sm:$0xff]
      %v1112 = vld [vmem:[%s10 + $0x268] sm:$0xff]
      %v1113 = vld [vmem:[%s10 + $0x270] sm:$0xff]
      %v1114 = vld [vmem:[%s10 + $0x278] sm:$0xff]
      %v1115 = vld [vmem:[%s10 + $0x280] sm:$0xff]
      %v1116 = vld [vmem:[%s10 + $0x288] sm:$0xff]
      %v1117 = vld [vmem:[%s10 + $0x290] sm:$0xff]
      %v1118 = vld [vmem:[%s10 + $0x298] sm:$0xff]
      %v1119 = vld [vmem:[%s10 + $0x2a0] sm:$0xff]
      %v1120 = vld [vmem:[%s10 + $0x2a8] sm:$0xff]
      %v1121 = vld [vmem:[%s10 + $0x2b0] sm:$0xff]
      %v1122 = vld [vmem:[%s10 + $0x2b8] sm:$0xff]
      %v1123 = vld [vmem:[%s10 + $0x2c0] sm:$0xff]
      %v1124 = vld [vmem:[%s10 + $0x2c8] sm:$0xff]
      %v1125 = vld [vmem:[%s10 + $0x2d0] sm:$0xff]
      %v1126 = vld [vmem:[%s10 + $0x2d8] sm:$0xff]
      %v1127 = vld [vmem:[%s10 + $0x2e0] sm:$0xff]
      %v1128 = vld [vmem:[%s10 + $0x2e8] sm:$0xff]
      %v1129 = vld [vmem:[%s10 + $0x2f0] sm:$0xff]
      %v1130 = vld [vmem:[%s10 + $0x2f8] sm:$0xff]
      %v1131 = vld [vmem:[%s10 + $0x300] sm:$0xff]
      %v1132 = vld [vmem:[%s10 + $0x308] sm:$0xff]
      %v1133 = vld [vmem:[%s10 + $0x310] sm:$0xff]
      %v1134 = vld [vmem:[%s10 + $0x318] sm:$0xff]
      %v1135 = vld [vmem:[%s10 + $0x320] sm:$0xff]
      %v1136 = vld [vmem:[%s10 + $0x328] sm:$0xff]
      %v1137 = vld [vmem:[%s10 + $0x330] sm:$0xff]
      %v1138 = vld [vmem:[%s10 + $0x338] sm:$0xff]
      %v1139 = vld [vmem:[%s10 + $0x340] sm:$0xff]
      %v1140 = vld [vmem:[%s10 + $0x348] sm:$0xff]
      %v1141 = vld [vmem:[%s10 + $0x350] sm:$0xff]
      %v1142 = vld [vmem:[%s10 + $0x358] sm:$0xff]
      %v1143 = vld [vmem:[%s10 + $0x360] sm:$0xff]
      %v1144 = vld [vmem:[%s10 + $0x368] sm:$0xff]
      %v1145 = vld [vmem:[%s10 + $0x370] sm:$0xff]
      %v1146 = vld [vmem:[%s10 + $0x378] sm:$0xff]
      %v1147 = vld [vmem:[%s11] sm:$0xf]
      %v1149 = vlaneseq
      %v1150 = vshrl.u32 %v1149, 7
      %v1151 = vsub.s32 0, %v1150
      %v1152 = vrot.slane %v1147, %v1151
      %v1153 = vlaneseq
      %v1154 = vshrl.u32 %v1153, 7
      %v1155 = vsub.s32 1, %v1154
      %v1156 = vrot.slane %v1147, %v1155
      %v1157 = vlaneseq
      %v1158 = vshrl.u32 %v1157, 7
      %v1159 = vsub.s32 2, %v1158
      %v1160 = vrot.slane %v1147, %v1159
      %v1161 = vlaneseq
      %v1162 = vshrl.u32 %v1161, 7
      %v1163 = vsub.s32 3, %v1162
      %v1164 = vrot.slane %v1147, %v1163
      %v1169 = vsel %vm1033, %v1029, 0
      %1171 = vmatprep.subr.mxu0 %v1036
      %1172 = vmatpush1.msra.mxu0 %v1035
      %1173 = vmatprep.subr.mxu0 %v1040
      %1174 = vmatpush1.msra.mxu0 %v1039
      %1175 = vmatprep.subr.mxu0 %v1044
      %1176 = vmatpush1.msra.mxu0 %v1043
      %1177 = vmatprep.subr.mxu0 %v1048
      %1178 = vmatpush1.msra.mxu0 %v1047
      %1179 = vmatprep.subr.mxu0 %v1052
      %1180 = vmatpush1.msra.mxu0 %v1051
      %1181 = vmatprep.subr.mxu0 %v1056
      %1182 = vmatpush1.msra.mxu0 %v1055
      %1183 = vmatprep.subr.mxu0 %v1060
      %1184 = vmatpush1.msra.mxu0 %v1059
      %1185 = vmatprep.subr.mxu0 %v1064
      %1186 = vmatpush1.msra.mxu0 %v1063
      %1187 = vmatprep.subr.mxu0 %v1068
      %1188 = vmatpush1.msra.mxu0 %v1067
      %1189 = vmatprep.subr.mxu0 %v1072
      %1190 = vmatpush1.msra.mxu0 %v1071
      %1191 = vmatprep.subr.mxu0 %v1076
      %1192 = vmatpush1.msra.mxu0 %v1075
      %1193 = vmatprep.subr.mxu0 %v1080
      %1194 = vmatpush1.msra.mxu0 %v1079
      %1195 = vmatprep.subr.mxu0 %v1084
      %1196 = vmatpush1.msra.mxu0 %v1083
      %1197 = vmatprep.subr.mxu0 %v1088
      %1198 = vmatpush1.msra.mxu0 %v1087
      %1199 = vmatprep.subr.mxu0 %v1092
      %1200 = vmatpush1.msra.mxu0 %v1091
      %1201 = vmatprep.subr.mxu0 %v1096
      %1202 = vmatpush1.msra.mxu0 %v1095
      %1203 = vmatprep.subr.mxu0 %v1100
      %1204 = vmatpush1.msra.mxu0 %v1099
      %1205 = vmatprep.subr.mxu0 %v1104
      %1206 = vmatpush1.msra.mxu0 %v1103
      %1207 = vmatprep.subr.mxu0 %v1108
      %1208 = vmatpush1.msra.mxu0 %v1107
      %1209 = vmatprep.subr.mxu0 %v1112
      %1210 = vmatpush1.msra.mxu0 %v1111
      %1211 = vmatprep.subr.mxu0 %v1116
      %1212 = vmatpush1.msra.mxu0 %v1115
      %1213 = vmatprep.subr.mxu0 %v1120
      %1214 = vmatpush1.msra.mxu0 %v1119
      %1215 = vmatprep.subr.mxu0 %v1124
      %1216 = vmatpush1.msra.mxu0 %v1123
      %1217 = vmatprep.subr.mxu0 %v1128
      %1218 = vmatpush1.msra.mxu0 %v1127
      %1219 = vmatprep.subr.mxu0 %v1132
      %1220 = vmatpush1.msra.mxu0 %v1131
      %1221 = vmatprep.subr.mxu0 %v1136
      %1222 = vmatpush1.msra.mxu0 %v1135
      %1223 = vmatprep.subr.mxu0 %v1140
      %1224 = vmatpush1.msra.mxu0 %v1139
      %1225 = vmatprep.subr.mxu0 %v1144
      %1226 = vmatpush1.msra.mxu0 %v1143
      %1227 = vmatprep.subr.mxu0 0.0
      %1228 = vmatpush1.msra.mxu0 0.0
      %1229 = vmatprep.subr.mxu0 0.0
      %1230 = vmatpush1.msra.mxu0 0.0
      %1231 = vmatprep.subr.mxu0 0.0
      %1232 = vmatpush1.msra.mxu0 0.0
      %1233 = vmatprep.subr.mxu0 0.0
      %1234 = vmatpush1.msra.mxu0 0.0
      %1235 = vmatprep.mubr.f32.mxu0 %v1169
      %1236 = vmatmul.mubr.f32.gmra.mrb[0].mxu0 %v1034
      %v1237 = vpop.f32.mrb[0].mxu0
      %v1238 = vadd.f32 %v1152, %v1237
      %v1239 = vpop.f32.mrb[0].mxu0
      %v1240 = vadd.f32 %v1156, %v1239
      %1241 = vdwg.mxu0
      %1242 = vmatprep.subr.mxu0 %v1038
      %1243 = vmatpush1.msra.mxu0 %v1037
      %1244 = vmatprep.subr.mxu0 %v1042
      %1245 = vmatpush1.msra.mxu0 %v1041
      %1246 = vmatprep.subr.mxu0 %v1046
      %1247 = vmatpush1.msra.mxu0 %v1045
      %1248 = vmatprep.subr.mxu0 %v1050
      %1249 = vmatpush1.msra.mxu0 %v1049
      %1250 = vmatprep.subr.mxu0 %v1054
      %1251 = vmatpush1.msra.mxu0 %v1053
      %1252 = vmatprep.subr.mxu0 %v1058
      %1253 = vmatpush1.msra.mxu0 %v1057
      %1254 = vmatprep.subr.mxu0 %v1062
      %1255 = vmatpush1.msra.mxu0 %v1061
      %1256 = vmatprep.subr.mxu0 %v1066
      %1257 = vmatpush1.msra.mxu0 %v1065
      %1258 = vmatprep.subr.mxu0 %v1070
      %1259 = vmatpush1.msra.mxu0 %v1069
      %1260 = vmatprep.subr.mxu0 %v1074
      %1261 = vmatpush1.msra.mxu0 %v1073
      %1262 = vmatprep.subr.mxu0 %v1078
      %1263 = vmatpush1.msra.mxu0 %v1077
      %1264 = vmatprep.subr.mxu0 %v1082
      %1265 = vmatpush1.msra.mxu0 %v1081
      %1266 = vmatprep.subr.mxu0 %v1086
      %1267 = vmatpush1.msra.mxu0 %v1085
      %1268 = vmatprep.subr.mxu0 %v1090
      %1269 = vmatpush1.msra.mxu0 %v1089
      %1270 = vmatprep.subr.mxu0 %v1094
      %1271 = vmatpush1.msra.mxu0 %v1093
      %1272 = vmatprep.subr.mxu0 %v1098
      %1273 = vmatpush1.msra.mxu0 %v1097
      %1274 = vmatprep.subr.mxu0 %v1102
      %1275 = vmatpush1.msra.mxu0 %v1101
      %1276 = vmatprep.subr.mxu0 %v1106
      %1277 = vmatpush1.msra.mxu0 %v1105
      %1278 = vmatprep.subr.mxu0 %v1110
      %1279 = vmatpush1.msra.mxu0 %v1109
      %1280 = vmatprep.subr.mxu0 %v1114
      %1281 = vmatpush1.msra.mxu0 %v1113
      %1282 = vmatprep.subr.mxu0 %v1118
      %1283 = vmatpush1.msra.mxu0 %v1117
      %1284 = vmatprep.subr.mxu0 %v1122
      %1285 = vmatpush1.msra.mxu0 %v1121
      %1286 = vmatprep.subr.mxu0 %v1126
      %1287 = vmatpush1.msra.mxu0 %v1125
      %1288 = vmatprep.subr.mxu0 %v1130
      %1289 = vmatpush1.msra.mxu0 %v1129
      %1290 = vmatprep.subr.mxu0 %v1134
      %1291 = vmatpush1.msra.mxu0 %v1133
      %1292 = vmatprep.subr.mxu0 %v1138
      %1293 = vmatpush1.msra.mxu0 %v1137
      %1294 = vmatprep.subr.mxu0 %v1142
      %1295 = vmatpush1.msra.mxu0 %v1141
      %1296 = vmatprep.subr.mxu0 %v1146
      %1297 = vmatpush1.msra.mxu0 %v1145
      %1298 = vmatprep.subr.mxu0 0.0
      %1299 = vmatpush1.msra.mxu0 0.0
      %1300 = vmatprep.subr.mxu0 0.0
      %1301 = vmatpush1.msra.mxu0 0.0
      %1302 = vmatprep.subr.mxu0 0.0
      %1303 = vmatpush1.msra.mxu0 0.0
      %1304 = vmatprep.subr.mxu0 0.0
      %1305 = vmatpush1.msra.mxu0 0.0
      %1306 = vmatprep.mubr.f32.mxu0 %v1169
      %1307 = vmatmul.mubr.f32.gmra.mrb[0].mxu0 %v1034
      %v1308 = vpop.f32.mrb[0].mxu0
      %v1309 = vadd.f32 %v1160, %v1308
      %v1310 = vpop.f32.mrb[0].mxu0
      %v1311 = vadd.f32 %v1164, %v1310
      %1312 = vdwg.mxu0
      %v1313 = vxor.u32 %v1238, 2147483648
      %v1314 = vmul.f32 %v1313, 1.442695
      %v1315 = vpow.pop %v1314
      %v1316 = vadd.f32 %v1315, 1.0
      %v1317 = vrcp.pop %v1316
      %v1318 = vmul.f32 1.0, %v1317
      %v1319 = vxor.u32 %v1240, 2147483648
      %v1320 = vmul.f32 %v1319, 1.442695
      %v1321 = vpow.pop %v1320
      %v1322 = vadd.f32 %v1321, 1.0
      %v1323 = vrcp.pop %v1322
      %v1324 = vmul.f32 1.0, %v1323
      %v1325 = vtanh.pop %v1309
      %v1326 = vxor.u32 %v1311, 2147483648
      %v1327 = vmul.f32 %v1326, 1.442695
      %v1328 = vpow.pop %v1327
      %v1329 = vadd.f32 %v1328, 1.0
      %v1330 = vrcp.pop %v1329
      %v1331 = vmul.f32 1.0, %v1330
      %v1332 = vmul.f32 %v1324, %v702
      %v1333 = vmul.f32 %v1318, %v1325
      %v1334 = vadd.f32 %v1332, %v1333
      %v1335 = vtanh.pop %v1334
      %v1336 = vmul.f32 %v1331, %v1335
      %1337 = vst [vmem:[#allocation3] sm:$0x3] %v1336
      %1338 = vst [vmem:[#allocation4] sm:$0x3] %v1334
      %1339 = vst [vmem:[%s443] sm:$0x3] %v1336
      %v1340 = vlaneseq
      %v1341 = vshrl.u32 %v1340, 7
      %v1342 = vsub.s32 %v871, %v1341
      %v1343 = vrot.slane %v980, %v1342
      %v1344 = vlaneseq
      %v1345 = vshrl.u32 %v1344, 7
      %v1346 = vsub.s32 %v876, %v1345
      %v1347 = vrot.slane %v985, %v1346
      %v1348 = vsel %vm881, %v1347, %v1343
      %v1349 = vlaneseq
      %v1350 = vshrl.u32 %v1349, 7
      %v1351 = vsub.s32 %v871, %v1350
      %v1352 = vrot.slane %v990, %v1351
      %v1353 = vlaneseq
      %v1354 = vshrl.u32 %v1353, 7
      %v1355 = vsub.s32 %v876, %v1354
      %v1356 = vrot.slane %v995, %v1355
      %v1357 = vsel %vm881, %v1356, %v1352
      %v1358 = vsel %vm892, %v1357, %v1348
      %vm1360 = vcmask 130048
      %v1361 = vsel %vm1360, %v1358, 0.0
      %1362 = vst [vmem:[%s447] sm:$0x3] %v1361
      %p1363 = scmp.lt.s32.totalorder %s26, 6
      %s1364 = scalar_select %p1363, %s26, 6
      %s1365 = smul.addr %s1364, 2
      %s1366 = scalar_lea.vmem %s12, %s1365
      %p1367 = scmp.lt.s32.totalorder %s26, 6
      %s1368 = scalar_select %p1367, %s26, 6
      %s1369 = smul.addr %s1368, 2
      %s1370 = scalar_lea.vmem %s13, %s1369
      // Predicated region
      $region73: #{encoder_decoder_forward.4} parent=67 // pred_check
        %p1371 = pneg %p301
      $region74: #{encoder_decoder_forward.4} parent=67 // pred_check_branch
        %1373 = sbr.rel (%p1371) target = $region76
      $region75: #{encoder_decoder_forward.4} parent=67 // pred_region
        _
      $region76: #{encoder_decoder_forward.4} parent=67 // pred_fallthru
        _
      // Predicated region
      $region77: #{encoder_decoder_forward.4} parent=67 // pred_check
        %p1374 = pneg %p327
      $region78: #{encoder_decoder_forward.4} parent=67 // pred_check_branch
        %1376 = sbr.rel (%p1374) target = $region80
      $region79: #{encoder_decoder_forward.4} parent=67 // pred_region
        _
      $region80: #{encoder_decoder_forward.4} parent=67 // pred_fallthru
        _
    $region68: #{encoder_decoder_forward.4} parent=5 // pred_fallthru
      _
    %p1377 = scmp.le.s32.totalorder 2, %s21
    // Predicated region
    $region81: #{encoder_decoder_forward.4} parent=5 // pred_check
      %p1378 = pneg %p1377
    $region82: #{encoder_decoder_forward.4} parent=5 // pred_check_branch
      %1380 = sbr.rel (%p1378) target = $region84
    $region83: #{encoder_decoder_forward.4} parent=5 // pred_region
      %s1381 = ssub.s32 %s21, 2
      // Predicated region
      $region85: #{encoder_decoder_forward.4} parent=83 // pred_check
        %p1382 = pneg %p307
      $region86: #{encoder_decoder_forward.4} parent=83 // pred_check_branch
        %1384 = sbr.rel (%p1382) target = $region88
      $region87: #{encoder_decoder_forward.4} parent=83 // pred_region
        %p1385 = scmp.lt.s32.totalorder %s27, 6
        %s1386 = scalar_select %p1385, %s27, 6
        %s1387 = smul.addr %s1386, 2
        %s1388 = scalar_lea.vmem %s12, %s1387
      $region88: #{encoder_decoder_forward.4} parent=83 // pred_fallthru
        _
      // Predicated region
      $region89: #{encoder_decoder_forward.4} parent=83 // pred_check
        %p1389 = pneg %p333
      $region90: #{encoder_decoder_forward.4} parent=83 // pred_check_branch
        %1391 = sbr.rel (%p1389) target = $region92
      $region91: #{encoder_decoder_forward.4} parent=83 // pred_region
        %p1392 = scmp.lt.s32.totalorder %s27, 6
        %s1393 = scalar_select %p1392, %s27, 6
        %s1394 = smul.addr %s1393, 2
        %s1395 = scalar_lea.vmem %s13, %s1394
      $region92: #{encoder_decoder_forward.4} parent=83 // pred_fallthru
        _
    $region84: #{encoder_decoder_forward.4} parent=5 // pred_fallthru
      _
  $region6: #{encoder_decoder_forward.4} parent=0 // loop_footer
    %s25 = sadd.s32 1, %s21
  $region7: #{encoder_decoder_forward.4} parent=0 // loop_footer_branch
    %20 = sbr.rel target = $region3
  $region8: #{encoder_decoder_forward.4} parent=0 // loop_exit
    _

</llo_original>
